<compile_context>
chip_gen: v7x
topology: tpu7x:2x2x1
jax: 0.10.0
libtpu: 0.0.40
codegen_flags: <defaults>
</compile_context>

<pallas_src>
import jax
import jax.numpy as jnp
from jax.experimental import pallas as pl
from jax.experimental.pallas import tpu as pltpu


def _round_up(n, m):
    return (n + m - 1) // m * m


def transformer_classifier_kernel(
    x_ref,      # (TB, D_in)       bf16 flattened image tile
    we_ref,     # (D_in, d_model)  bf16 token_embedding weight (transposed)
    b0_ref,     # (1, d_model)     f32  token_embedding bias + position embedding
    w1_ref,     # (d_model, d_ff)  bf16 fc1 weight (transposed)
    b1_ref,     # (1, d_ff)        f32
    w2_ref,     # (d_ff, d_model)  bf16 fc2 weight (transposed)
    b2_ref,     # (1, d_model)     f32
    g_ref,      # (1, d_model)     f32  layer_norm gamma
    beta_ref,   # (1, d_model)     f32  layer_norm beta
    wo_ref,     # (d_model, NCp)   bf16 fc_out weight (transposed, lane-padded)
    bo_ref,     # (1, NCp)         f32  fc_out bias (lane-padded)
    o_ref,      # (TB, NCp)        f32  logits (lane-padded)
):
    # token embedding + (bias + position embedding) fused into one add.
    # The PyTorch unsqueeze(1)/mean(dim=1) pair is identity for seq_len == 1.
    h = (
        jnp.dot(x_ref[...], we_ref[...], preferred_element_type=jnp.float32)
        + b0_ref[...]
    )

    # feed-forward block: relu(fc1) -> fc2   (bf16 into the MXU, f32 accumulate)
    h1 = jnp.maximum(
        jnp.dot(h.astype(jnp.bfloat16), w1_ref[...],
                preferred_element_type=jnp.float32) + b1_ref[...],
        0.0,
    )
    h2 = (
        jnp.dot(h1.astype(jnp.bfloat16), w2_ref[...],
                preferred_element_type=jnp.float32)
        + b2_ref[...]
    )

    # LayerNorm over features, eps = 1e-5 (PyTorch default).
    # One reduction pass: mean and E[x^2] from sum / sum-of-squares.
    d_model = h2.shape[-1]
    inv_d = 1.0 / d_model
    s = jnp.sum(h2, axis=-1, keepdims=True)
    ss = jnp.sum(h2 * h2, axis=-1, keepdims=True)
    mean = s * inv_d
    var = ss * inv_d - mean * mean
    ln = (h2 - mean) * jax.lax.rsqrt(var + 1e-5) * g_ref[...] + beta_ref[...]

    # classifier head (lane-padded to 128 for a dense store)
    o_ref[...] = (
        jnp.dot(ln.astype(jnp.bfloat16), wo_ref[...],
                preferred_element_type=jnp.float32)
        + bo_ref[...]
    )


def baseline_transformer_classifier(x_nchw, params, *, tile_b=None):
    """x_nchw: (B, C, H, W) float32.  Returns (B, num_classes) float32."""
    B = x_nchw.shape[0]
    x = x_nchw.reshape(B, -1).astype(jnp.float32)   # == torch x.view(batch, -1)
    d_in = x.shape[1]
    d_model = params["we"].shape[1]
    d_ff = params["w1"].shape[1]
    num_classes = params["wo"].shape[1]

    # lane-align the flattened input (zero x-cols / zero we-rows are inert)
    d_in_pad = _round_up(d_in, 128)
    we = params["we"]
    if d_in_pad != d_in:
        x = jnp.pad(x, ((0, 0), (0, d_in_pad - d_in)))
        we = jnp.pad(we, ((0, d_in_pad - d_in), (0, 0)))

    # lane-dense classifier head: pad num_classes up to a multiple of 128
    nc_pad = _round_up(num_classes, 128)
    wo = jnp.pad(params["wo"], ((0, 0), (0, nc_pad - num_classes)))
    bo = jnp.pad(params["bo"], ((0, 0), (0, nc_pad - num_classes)))

    # batch tiling (rows are the grid axis; weights stay resident in VMEM)
    if tile_b is None:
        tile_b = min(256, _round_up(B, 8))
    tile_b = max(8, _round_up(tile_b, 8))
    b_pad = _round_up(B, tile_b)
    if b_pad != B:
        x = jnp.pad(x, ((0, b_pad - B), (0, 0)))

    # bf16 for MXU throughput + halved HBM/VMEM traffic (f32 accumulation in-kernel)
    x_bf = x.astype(jnp.bfloat16)
    we_bf = we.astype(jnp.bfloat16)
    w1_bf = params["w1"].astype(jnp.bfloat16)
    w2_bf = params["w2"].astype(jnp.bfloat16)
    wo_bf = wo.astype(jnp.bfloat16)

    # fuse token-embedding bias + position embedding (both (1, d_model) constants)
    b0 = (params["be"] + params["pos"]).astype(jnp.float32)
    b1 = params["b1"].astype(jnp.float32)
    b2 = params["b2"].astype(jnp.float32)
    g = params["ln_g"].astype(jnp.float32)
    beta = params["ln_b"].astype(jnp.float32)

    grid = (b_pad // tile_b,)

    def resident(shape):
        # weights / biases: same block every grid step -> stay in VMEM
        return pl.BlockSpec(shape, lambda i: (0, 0))

    out_pad = pl.pallas_call(
        transformer_classifier_kernel,
        out_shape=jax.ShapeDtypeStruct((b_pad, nc_pad), jnp.float32),
        grid_spec=pltpu.PrefetchScalarGridSpec(
            num_scalar_prefetch=0,
            grid=grid,
            in_specs=[
                pl.BlockSpec((tile_b, d_in_pad), lambda i: (i, 0)),  # x tile
                resident((d_in_pad, d_model)),                        # we
                resident((1, d_model)),                               # b0
                resident((d_model, d_ff)),                            # w1
                resident((1, d_ff)),                                  # b1
                resident((d_ff, d_model)),                            # w2
                resident((1, d_model)),                               # b2
                resident((1, d_model)),                               # gamma
                resident((1, d_model)),                               # beta
                resident((d_model, nc_pad)),                          # wo
                resident((1, nc_pad)),                                # bo
            ],
            out_specs=pl.BlockSpec((tile_b, nc_pad), lambda i: (i, 0)),
        ),
        compiler_params=pltpu.CompilerParams(
            dimension_semantics=("parallel",),      # shards across v7x's 2 TCs
            vmem_limit_bytes=64 * 1024 * 1024,
        ),
    )(x_bf, we_bf, b0, w1_bf, b1, w2_bf, b2, g, beta, wo_bf, bo)

    return out_pad[:B, :num_classes]


def reference_forward(x_nchw, params):
    """Pure-JAX reference matching the PyTorch forward (bf16-rounded weights/input
    to match the kernel's storage dtype; math in f32)."""
    def q(w):
        return w.astype(jnp.bfloat16).astype(jnp.float32)

    B = x_nchw.shape[0]
    x = x_nchw.reshape(B, -1).astype(jnp.bfloat16).astype(jnp.float32)
    h = x @ q(params["we"]) + params["be"] + params["pos"]   # seq-len-1: unsqueeze/mean elided
    h = jnp.maximum(h @ q(params["w1"]) + params["b1"], 0.0)
    h = h @ q(params["w2"]) + params["b2"]
    mean = h.mean(-1, keepdims=True)
    var = ((h - mean) ** 2).mean(-1, keepdims=True)
    h = (h - mean) / jnp.sqrt(var + 1e-5) * params["ln_g"] + params["ln_b"]
    return h @ q(params["wo"]) + params["bo"]


def init_params(key, d_in, d_model, d_ff, num_classes):
    ks = jax.random.split(key, 6)
    scale = 0.02
    return {
        "we": scale * jax.random.normal(ks[0], (d_in, d_model), jnp.float32),
        "be": jnp.zeros((1, d_model), jnp.float32),
        "pos": jnp.zeros((1, d_model), jnp.float32),  # nn.Parameter(torch.zeros(1,1,d_model))
        "w1": scale * jax.random.normal(ks[1], (d_model, d_ff), jnp.float32),
        "b1": scale * jax.random.normal(ks[2], (1, d_ff), jnp.float32),
        "w2": scale * jax.random.normal(ks[3], (d_ff, d_model), jnp.float32),
        "b2": scale * jax.random.normal(ks[4], (1, d_model), jnp.float32),
        "ln_g": jnp.ones((1, d_model), jnp.float32),
        "ln_b": jnp.zeros((1, d_model), jnp.float32),
        "wo": scale * jax.random.normal(ks[5], (d_model, num_classes), jnp.float32),
        "bo": jnp.zeros((1, num_classes), jnp.float32),
    }


if __name__ == "__main__":
    # Small shapes consistent with the module: image (B, 3, H, W) flattened to
    # 3*H*W features, then d_model -> d_ff -> d_model -> num_classes.
    # Feature dims chosen as multiples of 128 so every lane is fully occupied.
    B, C, H, W = 64, 3, 16, 16
    d_model, d_ff, num_classes = 128, 256, 10
    d_in = C * H * W

    key = jax.random.PRNGKey(0)
    kx, kp = jax.random.split(key)
    x = jax.random.normal(kx, (B, C, H, W), jnp.float32)
    params = init_params(kp, d_in, d_model, d_ff, num_classes)

    # tile_b=32 -> grid=(2,): exercises the batch-tiled pipeline path.
    out = baseline_transformer_classifier(x, params, tile_b=32)
    out = jax.block_until_ready(out)

    ref = reference_forward(x, params)
    assert out.shape == (B, num_classes)
    assert jnp.allclose(out, ref, atol=2e-2, rtol=2e-2), "mismatch vs reference"

    print("KERNEL_OK")
</pallas_src>

<mosaic_0001>
module attributes {stable_mosaic.version = 11 : i64} {
  func.func @transformer_classifier_kernel(%arg0: i32, %arg1: memref<32x768xbf16, #tpu.memory_space<vmem>>, %arg2: memref<768x128xbf16, #tpu.memory_space<vmem>>, %arg3: memref<1x128xf32, #tpu.memory_space<vmem>>, %arg4: memref<128x256xbf16, #tpu.memory_space<vmem>>, %arg5: memref<1x256xf32, #tpu.memory_space<vmem>>, %arg6: memref<256x128xbf16, #tpu.memory_space<vmem>>, %arg7: memref<1x128xf32, #tpu.memory_space<vmem>>, %arg8: memref<1x128xf32, #tpu.memory_space<vmem>>, %arg9: memref<1x128xf32, #tpu.memory_space<vmem>>, %arg10: memref<128x128xbf16, #tpu.memory_space<vmem>>, %arg11: memref<1x128xf32, #tpu.memory_space<vmem>>, %arg12: memref<32x128xf32, #tpu.memory_space<vmem>>) attributes {dimension_semantics = [#tpu.dimension_semantics<parallel>], iteration_bounds = array<i64: 2>, scalar_prefetch = 0 : i64, scratch_operands = 0 : i64, tpu.core_type = #tpu.core_type<tc>, window_params = [{transform_indices = @transform_0, window_bounds = array<i64: 32, 768>}, {pipeline_mode = #tpu.pipeline_mode<synchronous>, transform_indices = @transform_1, window_bounds = array<i64: 768, 128>}, {pipeline_mode = #tpu.pipeline_mode<synchronous>, transform_indices = @transform_2, window_bounds = array<i64: 1, 128>}, {pipeline_mode = #tpu.pipeline_mode<synchronous>, transform_indices = @transform_3, window_bounds = array<i64: 128, 256>}, {pipeline_mode = #tpu.pipeline_mode<synchronous>, transform_indices = @transform_4, window_bounds = array<i64: 1, 256>}, {pipeline_mode = #tpu.pipeline_mode<synchronous>, transform_indices = @transform_5, window_bounds = array<i64: 256, 128>}, {pipeline_mode = #tpu.pipeline_mode<synchronous>, transform_indices = @transform_6, window_bounds = array<i64: 1, 128>}, {pipeline_mode = #tpu.pipeline_mode<synchronous>, transform_indices = @transform_7, window_bounds = array<i64: 1, 128>}, {pipeline_mode = #tpu.pipeline_mode<synchronous>, transform_indices = @transform_8, window_bounds = array<i64: 1, 128>}, {pipeline_mode = #tpu.pipeline_mode<synchronous>, transform_indices = @transform_9, window_bounds = array<i64: 128, 128>}, {pipeline_mode = #tpu.pipeline_mode<synchronous>, transform_indices = @transform_10, window_bounds = array<i64: 1, 128>}, {transform_indices = @transform_11, window_bounds = array<i64: 32, 128>}]} {
    %c0 = arith.constant 0 : index
    %c0_0 = arith.constant 0 : index
    %0 = vector.load %arg1[%c0, %c0_0] : memref<32x768xbf16, #tpu.memory_space<vmem>>, vector<32x768xbf16>
    %c0_1 = arith.constant 0 : index
    %c0_2 = arith.constant 0 : index
    %1 = vector.load %arg2[%c0_1, %c0_2] : memref<768x128xbf16, #tpu.memory_space<vmem>>, vector<768x128xbf16>
    %cst = arith.constant dense<0.000000e+00> : vector<32x128xf32>
    %2 = tpu.matmul %0, %1, %cst {dimension_numbers = #tpu.dot_dimension_numbers<[1], [0], [0], [1], [0, 0, 1, 1], [], []>} : vector<32x768xbf16>, vector<768x128xbf16>, vector<32x128xf32> -> vector<32x128xf32>
    %c0_3 = arith.constant 0 : index
    %c0_4 = arith.constant 0 : index
    %3 = vector.load %arg3[%c0_3, %c0_4] : memref<1x128xf32, #tpu.memory_space<vmem>>, vector<1x128xf32>
    %4 = vector.broadcast %3 : vector<1x128xf32> to vector<32x128xf32>
    %5 = arith.addf %2, %4 : vector<32x128xf32>
    %6 = arith.truncf %5 : vector<32x128xf32> to vector<32x128xbf16>
    %c0_5 = arith.constant 0 : index
    %c0_6 = arith.constant 0 : index
    %7 = vector.load %arg4[%c0_5, %c0_6] : memref<128x256xbf16, #tpu.memory_space<vmem>>, vector<128x256xbf16>
    %cst_7 = arith.constant dense<0.000000e+00> : vector<32x256xf32>
    %8 = tpu.matmul %6, %7, %cst_7 {dimension_numbers = #tpu.dot_dimension_numbers<[1], [0], [0], [1], [0, 0, 1, 1], [], []>} : vector<32x128xbf16>, vector<128x256xbf16>, vector<32x256xf32> -> vector<32x256xf32>
    %c0_8 = arith.constant 0 : index
    %c0_9 = arith.constant 0 : index
    %9 = vector.load %arg5[%c0_8, %c0_9] : memref<1x256xf32, #tpu.memory_space<vmem>>, vector<1x256xf32>
    %10 = vector.broadcast %9 : vector<1x256xf32> to vector<32x256xf32>
    %11 = arith.addf %8, %10 : vector<32x256xf32>
    %cst_10 = arith.constant 0.000000e+00 : f32
    %12 = vector.broadcast %cst_10 : f32 to vector<32x256xf32>
    %13 = arith.maximumf %11, %12 : vector<32x256xf32>
    %14 = arith.truncf %13 : vector<32x256xf32> to vector<32x256xbf16>
    %c0_11 = arith.constant 0 : index
    %c0_12 = arith.constant 0 : index
    %15 = vector.load %arg6[%c0_11, %c0_12] : memref<256x128xbf16, #tpu.memory_space<vmem>>, vector<256x128xbf16>
    %cst_13 = arith.constant dense<0.000000e+00> : vector<32x128xf32>
    %16 = tpu.matmul %14, %15, %cst_13 {dimension_numbers = #tpu.dot_dimension_numbers<[1], [0], [0], [1], [0, 0, 1, 1], [], []>} : vector<32x256xbf16>, vector<256x128xbf16>, vector<32x128xf32> -> vector<32x128xf32>
    %c0_14 = arith.constant 0 : index
    %c0_15 = arith.constant 0 : index
    %17 = vector.load %arg7[%c0_14, %c0_15] : memref<1x128xf32, #tpu.memory_space<vmem>>, vector<1x128xf32>
    %18 = vector.broadcast %17 : vector<1x128xf32> to vector<32x128xf32>
    %19 = arith.addf %16, %18 : vector<32x128xf32>
    %cst_16 = arith.constant dense<0.000000e+00> : vector<32xf32>
    %20 = vector.multi_reduction <add>, %19, %cst_16 [1] : vector<32x128xf32> to vector<32xf32>
    %21 = vector.shape_cast %20 : vector<32xf32> to vector<32x1xf32>
    %22 = arith.mulf %19, %19 : vector<32x128xf32>
    %cst_17 = arith.constant dense<0.000000e+00> : vector<32xf32>
    %23 = vector.multi_reduction <add>, %22, %cst_17 [1] : vector<32x128xf32> to vector<32xf32>
    %24 = vector.shape_cast %23 : vector<32xf32> to vector<32x1xf32>
    %cst_18 = arith.constant 7.812500e-03 : f32
    %25 = vector.broadcast %cst_18 : f32 to vector<32x1xf32>
    %26 = arith.mulf %21, %25 : vector<32x1xf32>
    %cst_19 = arith.constant 7.812500e-03 : f32
    %27 = vector.broadcast %cst_19 : f32 to vector<32x1xf32>
    %28 = arith.mulf %24, %27 : vector<32x1xf32>
    %29 = arith.mulf %26, %26 : vector<32x1xf32>
    %30 = arith.subf %28, %29 : vector<32x1xf32>
    %31 = vector.broadcast %26 : vector<32x1xf32> to vector<32x128xf32>
    %32 = arith.subf %19, %31 : vector<32x128xf32>
    %cst_20 = arith.constant 9.99999974E-6 : f32
    %33 = vector.broadcast %cst_20 : f32 to vector<32x1xf32>
    %34 = arith.addf %30, %33 : vector<32x1xf32>
    %35 = math.rsqrt %34 : vector<32x1xf32>
    %36 = vector.broadcast %35 : vector<32x1xf32> to vector<32x128xf32>
    %37 = arith.mulf %32, %36 : vector<32x128xf32>
    %c0_21 = arith.constant 0 : index
    %c0_22 = arith.constant 0 : index
    %38 = vector.load %arg8[%c0_21, %c0_22] : memref<1x128xf32, #tpu.memory_space<vmem>>, vector<1x128xf32>
    %39 = vector.broadcast %38 : vector<1x128xf32> to vector<32x128xf32>
    %40 = arith.mulf %37, %39 : vector<32x128xf32>
    %c0_23 = arith.constant 0 : index
    %c0_24 = arith.constant 0 : index
    %41 = vector.load %arg9[%c0_23, %c0_24] : memref<1x128xf32, #tpu.memory_space<vmem>>, vector<1x128xf32>
    %42 = vector.broadcast %41 : vector<1x128xf32> to vector<32x128xf32>
    %43 = arith.addf %40, %42 : vector<32x128xf32>
    %44 = arith.truncf %43 : vector<32x128xf32> to vector<32x128xbf16>
    %c0_25 = arith.constant 0 : index
    %c0_26 = arith.constant 0 : index
    %45 = vector.load %arg10[%c0_25, %c0_26] : memref<128x128xbf16, #tpu.memory_space<vmem>>, vector<128x128xbf16>
    %cst_27 = arith.constant dense<0.000000e+00> : vector<32x128xf32>
    %46 = tpu.matmul %44, %45, %cst_27 {dimension_numbers = #tpu.dot_dimension_numbers<[1], [0], [0], [1], [0, 0, 1, 1], [], []>} : vector<32x128xbf16>, vector<128x128xbf16>, vector<32x128xf32> -> vector<32x128xf32>
    %c0_28 = arith.constant 0 : index
    %c0_29 = arith.constant 0 : index
    %47 = vector.load %arg11[%c0_28, %c0_29] : memref<1x128xf32, #tpu.memory_space<vmem>>, vector<1x128xf32>
    %48 = vector.broadcast %47 : vector<1x128xf32> to vector<32x128xf32>
    %49 = arith.addf %46, %48 : vector<32x128xf32>
    %c0_30 = arith.constant 0 : index
    %c0_31 = arith.constant 0 : index
    %50 = vector.load %arg12[%c0_30, %c0_31] : memref<32x128xf32, #tpu.memory_space<vmem>>, vector<32x128xf32>
    tpu.vector_store %arg12[%c0_30, %c0_31], %49 {strides = array<i32>} : memref<32x128xf32, #tpu.memory_space<vmem>>, vector<32x128xf32>,
    return
  }
  func.func @transform_0(%arg0: i32) -> (i32, i32) {
    %c0_i32 = arith.constant 0 : i32
    %c0_i32_0 = arith.constant 0 : i32
    return %arg0, %c0_i32 : i32, i32
  }
  func.func @transform_1(%arg0: i32) -> (i32, i32) {
    %c0_i32 = arith.constant 0 : i32
    %c0_i32_0 = arith.constant 0 : i32
    %c0_i32_1 = arith.constant 0 : i32
    return %c0_i32, %c0_i32_0 : i32, i32
  }
  func.func @transform_2(%arg0: i32) -> (i32, i32) {
    %c0_i32 = arith.constant 0 : i32
    %c0_i32_0 = arith.constant 0 : i32
    %c0_i32_1 = arith.constant 0 : i32
    return %c0_i32, %c0_i32_0 : i32, i32
  }
  func.func @transform_3(%arg0: i32) -> (i32, i32) {
    %c0_i32 = arith.constant 0 : i32
    %c0_i32_0 = arith.constant 0 : i32
    %c0_i32_1 = arith.constant 0 : i32
    return %c0_i32, %c0_i32_0 : i32, i32
  }
  func.func @transform_4(%arg0: i32) -> (i32, i32) {
    %c0_i32 = arith.constant 0 : i32
    %c0_i32_0 = arith.constant 0 : i32
    %c0_i32_1 = arith.constant 0 : i32
    return %c0_i32, %c0_i32_0 : i32, i32
  }
  func.func @transform_5(%arg0: i32) -> (i32, i32) {
    %c0_i32 = arith.constant 0 : i32
    %c0_i32_0 = arith.constant 0 : i32
    %c0_i32_1 = arith.constant 0 : i32
    return %c0_i32, %c0_i32_0 : i32, i32
  }
  func.func @transform_6(%arg0: i32) -> (i32, i32) {
    %c0_i32 = arith.constant 0 : i32
    %c0_i32_0 = arith.constant 0 : i32
    %c0_i32_1 = arith.constant 0 : i32
    return %c0_i32, %c0_i32_0 : i32, i32
  }
  func.func @transform_7(%arg0: i32) -> (i32, i32) {
    %c0_i32 = arith.constant 0 : i32
    %c0_i32_0 = arith.constant 0 : i32
    %c0_i32_1 = arith.constant 0 : i32
    return %c0_i32, %c0_i32_0 : i32, i32
  }
  func.func @transform_8(%arg0: i32) -> (i32, i32) {
    %c0_i32 = arith.constant 0 : i32
    %c0_i32_0 = arith.constant 0 : i32
    %c0_i32_1 = arith.constant 0 : i32
    return %c0_i32, %c0_i32_0 : i32, i32
  }
  func.func @transform_9(%arg0: i32) -> (i32, i32) {
    %c0_i32 = arith.constant 0 : i32
    %c0_i32_0 = arith.constant 0 : i32
    %c0_i32_1 = arith.constant 0 : i32
    return %c0_i32, %c0_i32_0 : i32, i32
  }
  func.func @transform_10(%arg0: i32) -> (i32, i32) {
    %c0_i32 = arith.constant 0 : i32
    %c0_i32_0 = arith.constant 0 : i32
    %c0_i32_1 = arith.constant 0 : i32
    return %c0_i32, %c0_i32_0 : i32, i32
  }
  func.func @transform_11(%arg0: i32) -> (i32, i32) {
    %c0_i32 = arith.constant 0 : i32
    %c0_i32_0 = arith.constant 0 : i32
    return %arg0, %c0_i32 : i32, i32
  }
}

</mosaic_0001>

<llo_original>
// kernel: tpu_custom_call.1
$region0: #{tpu_custom_call.1}
  #allocation0 [shape = 'u32[]', space=smem, size = 0x4, offset = 0x4, fixed_abs, tag = 'smem constant byte address 0x4 - core index']
  #allocation1 [shape = 'u32[144,128]{1,0:T(1,128)}', space=vmem, size = 0x12000, scoped, tag = 'internal scratch']
  %s0 = inlined_call_operand.hbm [shape: bf16[64,768], index: 0, kind: input, shape index: {}]
  %s1 = inlined_call_operand.hbm [shape: bf16[768,128], index: 1, kind: input, shape index: {}]
  %s2 = inlined_call_operand.hbm [shape: f32[1,128], index: 2, kind: input, shape index: {}]
  %s3 = inlined_call_operand.hbm [shape: bf16[128,256], index: 3, kind: input, shape index: {}]
  %s4 = inlined_call_operand.hbm [shape: f32[1,256], index: 4, kind: input, shape index: {}]
  %s5 = inlined_call_operand.hbm [shape: bf16[256,128], index: 5, kind: input, shape index: {}]
  %s6 = inlined_call_operand.hbm [shape: f32[1,128], index: 6, kind: input, shape index: {}]
  %s7 = inlined_call_operand.hbm [shape: f32[1,128], index: 7, kind: input, shape index: {}]
  %s8 = inlined_call_operand.hbm [shape: f32[1,128], index: 8, kind: input, shape index: {}]
  %s9 = inlined_call_operand.hbm [shape: bf16[128,128], index: 9, kind: input, shape index: {}]
  %s10 = inlined_call_operand.hbm [shape: f32[1,128], index: 10, kind: input, shape index: {}]
  %s11 = inlined_call_operand.hbm [shape: f32[64,128], index: 11, kind: output, shape index: {}]
  %s12 = sld [smem:[#allocation0]]
  $region121: #{tpu_custom_call.1} parent=0
    _
  %s14 = ssub.s32 1, %s12
  %s15 = scalar_select 0, %s14, %s12
  $region1: #{tpu_custom_call.1} parent=0
    #allocation2 [shape = 'u8[98304]{0}', space=vmem, size = 0x18000, scoped, tag = 'input window, operand 0']
    #allocation3 [shape = 's32[2]{0}', space=sflag, size = 0x8, scoped, tag = 'scoped memory for tpu_custom_call.1']
    #allocation4 [shape = 's32[2]{0}', space=sflag, size = 0x8, scoped, tag = 'scoped memory for tpu_custom_call.1']
    #allocation5 [shape = 'u8[196608]{0}', space=vmem, size = 0x30000, scoped, tag = 'input window, operand 1, single buffered']
    #allocation6 [shape = 's32[1]{0}', space=sflag, size = 0x4, scoped, tag = 'scoped memory for tpu_custom_call.1']
    #allocation7 [shape = 'u8[512]{0}', space=vmem, size = 0x400, scoped, tag = 'input window, operand 2, single buffered']
    #allocation8 [shape = 'u8[65536]{0}', space=vmem, size = 0x10000, scoped, tag = 'input window, operand 3, single buffered']
    #allocation9 [shape = 's32[1]{0}', space=sflag, size = 0x4, scoped, tag = 'scoped memory for tpu_custom_call.1']
    #allocation10 [shape = 'u8[1024]{0}', space=vmem, size = 0x400, scoped, tag = 'input window, operand 4, single buffered']
    #allocation11 [shape = 'u8[65536]{0}', space=vmem, size = 0x10000, scoped, tag = 'input window, operand 5, single buffered']
    #allocation12 [shape = 's32[1]{0}', space=sflag, size = 0x4, scoped, tag = 'scoped memory for tpu_custom_call.1']
    #allocation13 [shape = 'u8[512]{0}', space=vmem, size = 0x400, scoped, tag = 'input window, operand 6, single buffered']
    #allocation14 [shape = 'u8[512]{0}', space=vmem, size = 0x400, scoped, tag = 'input window, operand 7, single buffered']
    #allocation15 [shape = 's32[1]{0}', space=sflag, size = 0x4, scoped, tag = 'scoped memory for tpu_custom_call.1']
    #allocation16 [shape = 'u8[512]{0}', space=vmem, size = 0x400, scoped, tag = 'input window, operand 8, single buffered']
    #allocation17 [shape = 'u8[32768]{0}', space=vmem, size = 0x8000, scoped, tag = 'input window, operand 9, single buffered']
    #allocation18 [shape = 's32[1]{0}', space=sflag, size = 0x4, scoped, tag = 'scoped memory for tpu_custom_call.1']
    #allocation19 [shape = 'u8[512]{0}', space=vmem, size = 0x400, scoped, tag = 'input window, operand 10, single buffered']
    #allocation20 [shape = 'u8[32768]{0}', space=vmem, size = 0x8000, scoped, tag = 'output window, operand 0']
    %16 = vsyncpa [#allocation3], 0
    %s17 = scalar_lea.sflag [#allocation3], 1
    %18 = vsyncpa %s17, 0
    %19 = vsyncpa [#allocation6], 0
    %20 = vsyncpa [#allocation9], 0
    %21 = vsyncpa [#allocation12], 0
    %22 = vsyncpa [#allocation15], 0
    %23 = vsyncpa [#allocation18], 0
    %24 = vsyncpa [#allocation4], 0
    %s25 = scalar_lea.sflag [#allocation4], 1
    %26 = vsyncpa %s25, 0
    loop: start=0, step=1, limit=4
    $region2: #{tpu_custom_call.1} parent=1 // loop_pre_header
      _
    $region3: #{tpu_custom_call.1} parent=1 // loop_header
      %s28 = sphi 0, %s32
      %p29 = scmp.ge.s32.totalorder %s28, 4
      %s38 = sphi 0, %s40
      %s41 = sphi 0, %s38
      %s42 = sphi 0, %s41
      %s58 = sphi 0, %s42
      %s62 = sphi 0, %s62
      %s64 = sphi 0, %s62
      %s65 = sphi 0, %s64
      %s79 = sphi 0, %s65
      %s83 = sphi 0, %s83
      %s85 = sphi 0, %s83
      %s86 = sphi 0, %s85
      %s100 = sphi 0, %s86
      %s104 = sphi 0, %s104
      %s106 = sphi 0, %s104
      %s107 = sphi 0, %s106
      %s121 = sphi 0, %s107
      %s125 = sphi 0, %s125
      %s127 = sphi 0, %s125
      %s128 = sphi 0, %s127
      %s142 = sphi 0, %s128
      %s146 = sphi 0, %s146
      %s148 = sphi 0, %s146
      %s149 = sphi 0, %s148
      %s163 = sphi 0, %s149
      %s167 = sphi 0, %s167
      %s169 = sphi 0, %s167
      %s170 = sphi 0, %s169
      %s184 = sphi 0, %s170
      %s188 = sphi 0, %s188
      %s190 = sphi 0, %s188
      %s191 = sphi 0, %s190
      %s205 = sphi 0, %s191
      %s209 = sphi 0, %s209
      %s211 = sphi 0, %s209
      %s212 = sphi 0, %s211
      %s226 = sphi 0, %s212
      %s230 = sphi 0, %s230
      %s232 = sphi 0, %s230
      %s233 = sphi 0, %s232
      %s247 = sphi 0, %s233
      %s251 = sphi 0, %s251
      %s253 = sphi 0, %s251
      %s254 = sphi 0, %s253
      %s268 = sphi 0, %s254
      %s274 = sphi 0, %s276
      %s277 = sphi 0, %s274
      %s278 = sphi 0, %s277
      %s294 = sphi 0, %s278
    $region4: #{tpu_custom_call.1} parent=1 // loop_header_branch
      %31 = sbr.rel (%p29) target = $region8
    $region5: #{tpu_custom_call.1} parent=1 // loop_body
      %s33 = ssub.s32 %s28, 1
      %s34 = ssub.s32 %s28, 2
      %s35 = sadd.s32 %s28, 1
      %s36 = ssub.s32 %s28, %s35
      %p37 = scmp.eq.s32.totalorder %s36, 0
      %s39 = sadd.s32 %s38, 1
      %s40 = scalar_select %p37, %s38, %s39
      %p43 = pneg %p37
      %p44 = scmp.eq.s32.totalorder %s28, 1
      %p45 = por %p43, %p44
      %p46 = scmp.ne.s32.totalorder %s38, %s41
      %p47 = scmp.eq.s32.totalorder %s28, 0
      %p48 = por %p46, %p47
      %p49 = scmp.ne.s32.totalorder %s38, %s41
      %p50 = scmp.eq.s32.totalorder %s33, 1
      %p51 = por %p49, %p50
      %p52 = scmp.ne.s32.totalorder %s41, %s42
      %p53 = scmp.eq.s32.totalorder %s33, 0
      %p54 = por %p52, %p53
      %p55 = scmp.ne.s32.totalorder %s41, %s42
      %p56 = scmp.eq.s32.totalorder %s34, 1
      %p57 = por %p55, %p56
      %p59 = scmp.ne.s32.totalorder %s42, %s58
      %p60 = scmp.eq.s32.totalorder %s34, 0
      %p61 = por %p59, %p60
      %s63 = sadd.s32 %s62, 1
      %p66 = scmp.eq.s32.totalorder %s28, 1
      %p67 = scmp.ne.s32.totalorder %s62, %s64
      %p68 = scmp.eq.s32.totalorder %s28, 0
      %p69 = por %p67, %p68
      %p70 = scmp.ne.s32.totalorder %s62, %s64
      %p71 = scmp.eq.s32.totalorder %s33, 1
      %p72 = por %p70, %p71
      %p73 = scmp.ne.s32.totalorder %s64, %s65
      %p74 = scmp.eq.s32.totalorder %s33, 0
      %p75 = por %p73, %p74
      %p76 = scmp.ne.s32.totalorder %s64, %s65
      %p77 = scmp.eq.s32.totalorder %s34, 1
      %p78 = por %p76, %p77
      %p80 = scmp.ne.s32.totalorder %s65, %s79
      %p81 = scmp.eq.s32.totalorder %s34, 0
      %p82 = por %p80, %p81
      %s84 = sadd.s32 %s83, 1
      %p87 = scmp.eq.s32.totalorder %s28, 1
      %p88 = scmp.ne.s32.totalorder %s83, %s85
      %p89 = scmp.eq.s32.totalorder %s28, 0
      %p90 = por %p88, %p89
      %p91 = scmp.ne.s32.totalorder %s83, %s85
      %p92 = scmp.eq.s32.totalorder %s33, 1
      %p93 = por %p91, %p92
      %p94 = scmp.ne.s32.totalorder %s85, %s86
      %p95 = scmp.eq.s32.totalorder %s33, 0
      %p96 = por %p94, %p95
      %p97 = scmp.ne.s32.totalorder %s85, %s86
      %p98 = scmp.eq.s32.totalorder %s34, 1
      %p99 = por %p97, %p98
      %p101 = scmp.ne.s32.totalorder %s86, %s100
      %p102 = scmp.eq.s32.totalorder %s34, 0
      %p103 = por %p101, %p102
      %s105 = sadd.s32 %s104, 1
      %p108 = scmp.eq.s32.totalorder %s28, 1
      %p109 = scmp.ne.s32.totalorder %s104, %s106
      %p110 = scmp.eq.s32.totalorder %s28, 0
      %p111 = por %p109, %p110
      %p112 = scmp.ne.s32.totalorder %s104, %s106
      %p113 = scmp.eq.s32.totalorder %s33, 1
      %p114 = por %p112, %p113
      %p115 = scmp.ne.s32.totalorder %s106, %s107
      %p116 = scmp.eq.s32.totalorder %s33, 0
      %p117 = por %p115, %p116
      %p118 = scmp.ne.s32.totalorder %s106, %s107
      %p119 = scmp.eq.s32.totalorder %s34, 1
      %p120 = por %p118, %p119
      %p122 = scmp.ne.s32.totalorder %s107, %s121
      %p123 = scmp.eq.s32.totalorder %s34, 0
      %p124 = por %p122, %p123
      %s126 = sadd.s32 %s125, 1
      %p129 = scmp.eq.s32.totalorder %s28, 1
      %p130 = scmp.ne.s32.totalorder %s125, %s127
      %p131 = scmp.eq.s32.totalorder %s28, 0
      %p132 = por %p130, %p131
      %p133 = scmp.ne.s32.totalorder %s125, %s127
      %p134 = scmp.eq.s32.totalorder %s33, 1
      %p135 = por %p133, %p134
      %p136 = scmp.ne.s32.totalorder %s127, %s128
      %p137 = scmp.eq.s32.totalorder %s33, 0
      %p138 = por %p136, %p137
      %p139 = scmp.ne.s32.totalorder %s127, %s128
      %p140 = scmp.eq.s32.totalorder %s34, 1
      %p141 = por %p139, %p140
      %p143 = scmp.ne.s32.totalorder %s128, %s142
      %p144 = scmp.eq.s32.totalorder %s34, 0
      %p145 = por %p143, %p144
      %s147 = sadd.s32 %s146, 1
      %p150 = scmp.eq.s32.totalorder %s28, 1
      %p151 = scmp.ne.s32.totalorder %s146, %s148
      %p152 = scmp.eq.s32.totalorder %s28, 0
      %p153 = por %p151, %p152
      %p154 = scmp.ne.s32.totalorder %s146, %s148
      %p155 = scmp.eq.s32.totalorder %s33, 1
      %p156 = por %p154, %p155
      %p157 = scmp.ne.s32.totalorder %s148, %s149
      %p158 = scmp.eq.s32.totalorder %s33, 0
      %p159 = por %p157, %p158
      %p160 = scmp.ne.s32.totalorder %s148, %s149
      %p161 = scmp.eq.s32.totalorder %s34, 1
      %p162 = por %p160, %p161
      %p164 = scmp.ne.s32.totalorder %s149, %s163
      %p165 = scmp.eq.s32.totalorder %s34, 0
      %p166 = por %p164, %p165
      %s168 = sadd.s32 %s167, 1
      %p171 = scmp.eq.s32.totalorder %s28, 1
      %p172 = scmp.ne.s32.totalorder %s167, %s169
      %p173 = scmp.eq.s32.totalorder %s28, 0
      %p174 = por %p172, %p173
      %p175 = scmp.ne.s32.totalorder %s167, %s169
      %p176 = scmp.eq.s32.totalorder %s33, 1
      %p177 = por %p175, %p176
      %p178 = scmp.ne.s32.totalorder %s169, %s170
      %p179 = scmp.eq.s32.totalorder %s33, 0
      %p180 = por %p178, %p179
      %p181 = scmp.ne.s32.totalorder %s169, %s170
      %p182 = scmp.eq.s32.totalorder %s34, 1
      %p183 = por %p181, %p182
      %p185 = scmp.ne.s32.totalorder %s170, %s184
      %p186 = scmp.eq.s32.totalorder %s34, 0
      %p187 = por %p185, %p186
      %s189 = sadd.s32 %s188, 1
      %p192 = scmp.eq.s32.totalorder %s28, 1
      %p193 = scmp.ne.s32.totalorder %s188, %s190
      %p194 = scmp.eq.s32.totalorder %s28, 0
      %p195 = por %p193, %p194
      %p196 = scmp.ne.s32.totalorder %s188, %s190
      %p197 = scmp.eq.s32.totalorder %s33, 1
      %p198 = por %p196, %p197
      %p199 = scmp.ne.s32.totalorder %s190, %s191
      %p200 = scmp.eq.s32.totalorder %s33, 0
      %p201 = por %p199, %p200
      %p202 = scmp.ne.s32.totalorder %s190, %s191
      %p203 = scmp.eq.s32.totalorder %s34, 1
      %p204 = por %p202, %p203
      %p206 = scmp.ne.s32.totalorder %s191, %s205
      %p207 = scmp.eq.s32.totalorder %s34, 0
      %p208 = por %p206, %p207
      %s210 = sadd.s32 %s209, 1
      %p213 = scmp.eq.s32.totalorder %s28, 1
      %p214 = scmp.ne.s32.totalorder %s209, %s211
      %p215 = scmp.eq.s32.totalorder %s28, 0
      %p216 = por %p214, %p215
      %p217 = scmp.ne.s32.totalorder %s209, %s211
      %p218 = scmp.eq.s32.totalorder %s33, 1
      %p219 = por %p217, %p218
      %p220 = scmp.ne.s32.totalorder %s211, %s212
      %p221 = scmp.eq.s32.totalorder %s33, 0
      %p222 = por %p220, %p221
      %p223 = scmp.ne.s32.totalorder %s211, %s212
      %p224 = scmp.eq.s32.totalorder %s34, 1
      %p225 = por %p223, %p224
      %p227 = scmp.ne.s32.totalorder %s212, %s226
      %p228 = scmp.eq.s32.totalorder %s34, 0
      %p229 = por %p227, %p228
      %s231 = sadd.s32 %s230, 1
      %p234 = scmp.eq.s32.totalorder %s28, 1
      %p235 = scmp.ne.s32.totalorder %s230, %s232
      %p236 = scmp.eq.s32.totalorder %s28, 0
      %p237 = por %p235, %p236
      %p238 = scmp.ne.s32.totalorder %s230, %s232
      %p239 = scmp.eq.s32.totalorder %s33, 1
      %p240 = por %p238, %p239
      %p241 = scmp.ne.s32.totalorder %s232, %s233
      %p242 = scmp.eq.s32.totalorder %s33, 0
      %p243 = por %p241, %p242
      %p244 = scmp.ne.s32.totalorder %s232, %s233
      %p245 = scmp.eq.s32.totalorder %s34, 1
      %p246 = por %p244, %p245
      %p248 = scmp.ne.s32.totalorder %s233, %s247
      %p249 = scmp.eq.s32.totalorder %s34, 0
      %p250 = por %p248, %p249
      %s252 = sadd.s32 %s251, 1
      %p255 = scmp.eq.s32.totalorder %s28, 1
      %p256 = scmp.ne.s32.totalorder %s251, %s253
      %p257 = scmp.eq.s32.totalorder %s28, 0
      %p258 = por %p256, %p257
      %p259 = scmp.ne.s32.totalorder %s251, %s253
      %p260 = scmp.eq.s32.totalorder %s33, 1
      %p261 = por %p259, %p260
      %p262 = scmp.ne.s32.totalorder %s253, %s254
      %p263 = scmp.eq.s32.totalorder %s33, 0
      %p264 = por %p262, %p263
      %p265 = scmp.ne.s32.totalorder %s253, %s254
      %p266 = scmp.eq.s32.totalorder %s34, 1
      %p267 = por %p265, %p266
      %p269 = scmp.ne.s32.totalorder %s254, %s268
      %p270 = scmp.eq.s32.totalorder %s34, 0
      %p271 = por %p269, %p270
      %s272 = ssub.s32 %s28, %s35
      %p273 = scmp.eq.s32.totalorder %s272, 0
      %s275 = sadd.s32 %s274, 1
      %s276 = scalar_select %p273, %s274, %s275
      %p279 = pneg %p273
      %p280 = scmp.eq.s32.totalorder %s28, 1
      %p281 = por %p279, %p280
      %p282 = scmp.ne.s32.totalorder %s274, %s277
      %p283 = scmp.eq.s32.totalorder %s28, 0
      %p284 = por %p282, %p283
      %p285 = scmp.ne.s32.totalorder %s274, %s277
      %p286 = scmp.eq.s32.totalorder %s33, 1
      %p287 = por %p285, %p286
      %p288 = scmp.ne.s32.totalorder %s277, %s278
      %p289 = scmp.eq.s32.totalorder %s33, 0
      %p290 = por %p288, %p289
      %p291 = scmp.ne.s32.totalorder %s277, %s278
      %p292 = scmp.eq.s32.totalorder %s34, 1
      %p293 = por %p291, %p292
      %p295 = scmp.ne.s32.totalorder %s278, %s294
      %p296 = scmp.eq.s32.totalorder %s34, 0
      %p297 = por %p295, %p296
      %p298 = scmp.le.s32.totalorder 1, %s28
      %p299 = scmp.lt.s32.totalorder %s28, 3
      %p300 = pnand %p298, %p299
      %p301 = pneg %p300
      // Predicated region
      $region9: #{tpu_custom_call.1} parent=5 // pred_check
        _
      $region10: #{tpu_custom_call.1} parent=5 // pred_check_branch
        %303 = sbr.rel (%p300) target = $region12
      $region11: #{tpu_custom_call.1} parent=5 // pred_region
        %s304 = ssub.s32 %s28, 1
        // Predicated region
        $region13: #{tpu_custom_call.1} parent=11 // pred_check
          %p305 = pneg %p75
        $region14: #{tpu_custom_call.1} parent=11 // pred_check_branch
          %307 = sbr.rel (%p305) target = $region16
        $region15: #{tpu_custom_call.1} parent=11 // pred_region
          %s309 = ssub.s32 6144, 6144
          %310 = vsyncadd [#allocation6], %s309
          %s311 = sshll.u32 [#allocation5], 4
          %s312 = int_to_ptr.vmem [resolvable:$true] %s311
          %317 = dma.hbm_to_vmem [thread:$0]  %s1, 6144, %s312, [#allocation6], 64, 64, 4
        $region16: #{tpu_custom_call.1} parent=11 // pred_fallthru
          _
        // Predicated region
        $region17: #{tpu_custom_call.1} parent=11 // pred_check
          %p318 = pneg %p96
        $region18: #{tpu_custom_call.1} parent=11 // pred_check_branch
          %320 = sbr.rel (%p318) target = $region20
        $region19: #{tpu_custom_call.1} parent=11 // pred_region
          %s322 = ssub.s32 16, 16
          %323 = vsyncadd [#allocation6], %s322
          %s325 = sshll.u32 [#allocation7], 4
          %s326 = int_to_ptr.vmem [resolvable:$true] %s325
          %328 = dma.hbm_to_vmem [thread:$0]  %s2, 16, %s326, [#allocation6]
        $region20: #{tpu_custom_call.1} parent=11 // pred_fallthru
          _
        // Predicated region
        $region21: #{tpu_custom_call.1} parent=11 // pred_check
          %p329 = pneg %p117
        $region22: #{tpu_custom_call.1} parent=11 // pred_check_branch
          %331 = sbr.rel (%p329) target = $region24
        $region23: #{tpu_custom_call.1} parent=11 // pred_region
          %s333 = ssub.s32 2048, 2048
          %334 = vsyncadd [#allocation9], %s333
          %s335 = sshll.u32 [#allocation8], 4
          %s336 = int_to_ptr.vmem [resolvable:$true] %s335
          %341 = dma.hbm_to_vmem [thread:$0]  %s3, 2048, %s336, [#allocation9], 128, 128, 8
        $region24: #{tpu_custom_call.1} parent=11 // pred_fallthru
          _
        // Predicated region
        $region25: #{tpu_custom_call.1} parent=11 // pred_check
          %p342 = pneg %p138
        $region26: #{tpu_custom_call.1} parent=11 // pred_check_branch
          %344 = sbr.rel (%p342) target = $region28
        $region27: #{tpu_custom_call.1} parent=11 // pred_region
          %s346 = ssub.s32 32, 32
          %347 = vsyncadd [#allocation9], %s346
          %s349 = sshll.u32 [#allocation10], 4
          %s350 = int_to_ptr.vmem [resolvable:$true] %s349
          %352 = dma.hbm_to_vmem [thread:$0]  %s4, 32, %s350, [#allocation9]
        $region28: #{tpu_custom_call.1} parent=11 // pred_fallthru
          _
        // Predicated region
        $region29: #{tpu_custom_call.1} parent=11 // pred_check
          %p353 = pneg %p159
        $region30: #{tpu_custom_call.1} parent=11 // pred_check_branch
          %355 = sbr.rel (%p353) target = $region32
        $region31: #{tpu_custom_call.1} parent=11 // pred_region
          %s357 = ssub.s32 2048, 2048
          %358 = vsyncadd [#allocation12], %s357
          %s359 = sshll.u32 [#allocation11], 4
          %s360 = int_to_ptr.vmem [resolvable:$true] %s359
          %365 = dma.hbm_to_vmem [thread:$0]  %s5, 2048, %s360, [#allocation12], 64, 64, 4
        $region32: #{tpu_custom_call.1} parent=11 // pred_fallthru
          _
        // Predicated region
        $region33: #{tpu_custom_call.1} parent=11 // pred_check
          %p366 = pneg %p180
        $region34: #{tpu_custom_call.1} parent=11 // pred_check_branch
          %368 = sbr.rel (%p366) target = $region36
        $region35: #{tpu_custom_call.1} parent=11 // pred_region
          %s370 = ssub.s32 16, 16
          %371 = vsyncadd [#allocation12], %s370
          %s373 = sshll.u32 [#allocation13], 4
          %s374 = int_to_ptr.vmem [resolvable:$true] %s373
          %376 = dma.hbm_to_vmem [thread:$0]  %s6, 16, %s374, [#allocation12]
        $region36: #{tpu_custom_call.1} parent=11 // pred_fallthru
          _
        // Predicated region
        $region37: #{tpu_custom_call.1} parent=11 // pred_check
          %p377 = pneg %p201
        $region38: #{tpu_custom_call.1} parent=11 // pred_check_branch
          %379 = sbr.rel (%p377) target = $region40
        $region39: #{tpu_custom_call.1} parent=11 // pred_region
          %s381 = ssub.s32 16, 16
          %382 = vsyncadd [#allocation15], %s381
          %s384 = sshll.u32 [#allocation14], 4
          %s385 = int_to_ptr.vmem [resolvable:$true] %s384
          %387 = dma.hbm_to_vmem [thread:$0]  %s7, 16, %s385, [#allocation15]
        $region40: #{tpu_custom_call.1} parent=11 // pred_fallthru
          _
        // Predicated region
        $region41: #{tpu_custom_call.1} parent=11 // pred_check
          %p388 = pneg %p222
        $region42: #{tpu_custom_call.1} parent=11 // pred_check_branch
          %390 = sbr.rel (%p388) target = $region44
        $region43: #{tpu_custom_call.1} parent=11 // pred_region
          %s392 = ssub.s32 16, 16
          %393 = vsyncadd [#allocation15], %s392
          %s395 = sshll.u32 [#allocation16], 4
          %s396 = int_to_ptr.vmem [resolvable:$true] %s395
          %398 = dma.hbm_to_vmem [thread:$0]  %s8, 16, %s396, [#allocation15]
        $region44: #{tpu_custom_call.1} parent=11 // pred_fallthru
          _
        // Predicated region
        $region45: #{tpu_custom_call.1} parent=11 // pred_check
          %p399 = pneg %p243
        $region46: #{tpu_custom_call.1} parent=11 // pred_check_branch
          %401 = sbr.rel (%p399) target = $region48
        $region47: #{tpu_custom_call.1} parent=11 // pred_region
          %s403 = ssub.s32 1024, 1024
          %404 = vsyncadd [#allocation18], %s403
          %s405 = sshll.u32 [#allocation17], 4
          %s406 = int_to_ptr.vmem [resolvable:$true] %s405
          %411 = dma.hbm_to_vmem [thread:$0]  %s9, 1024, %s406, [#allocation18], 64, 64, 4
        $region48: #{tpu_custom_call.1} parent=11 // pred_fallthru
          _
        // Predicated region
        $region49: #{tpu_custom_call.1} parent=11 // pred_check
          %p412 = pneg %p264
        $region50: #{tpu_custom_call.1} parent=11 // pred_check_branch
          %414 = sbr.rel (%p412) target = $region52
        $region51: #{tpu_custom_call.1} parent=11 // pred_region
          %s416 = ssub.s32 16, 16
          %417 = vsyncadd [#allocation18], %s416
          %s419 = sshll.u32 [#allocation19], 4
          %s420 = int_to_ptr.vmem [resolvable:$true] %s419
          %422 = dma.hbm_to_vmem [thread:$0]  %s10, 16, %s420, [#allocation18]
        $region52: #{tpu_custom_call.1} parent=11 // pred_fallthru
          _
      $region12: #{tpu_custom_call.1} parent=5 // pred_fallthru
        _
      %p423 = scmp.lt.s32.totalorder %s28, 2
      // Predicated region
      $region53: #{tpu_custom_call.1} parent=5 // pred_check
        %p424 = pneg %p423
      $region54: #{tpu_custom_call.1} parent=5 // pred_check_branch
        %426 = sbr.rel (%p424) target = $region56
      $region55: #{tpu_custom_call.1} parent=5 // pred_region
        // Predicated region
        $region57: #{tpu_custom_call.1} parent=55 // pred_check
          %p427 = pneg %p48
        $region58: #{tpu_custom_call.1} parent=55 // pred_check_branch
          %429 = sbr.rel (%p427) target = $region60
        $region59: #{tpu_custom_call.1} parent=55 // pred_region
          %s430 = sand.u32 %s38, 1
          %s431 = scalar_lea.sflag [#allocation3], %s430
          %s432 = sand.u32 %s38, 1
          %s433 = smul.addr %s432, 96
          %s434 = scalar_lea.vmem [#allocation2], %s433
          %s435 = smul.u32 4, %s28
          %s437 = ssub.s32 1536, 1536
          %438 = vsyncadd %s431, %s437
          %s439 = smul.addr %s435, 6
          %s440 = smul.addr %s439, 64
          %s441 = scalar_lea.hbm %s0, %s440
          %s442 = sshll.u32 %s434, 4
          %s443 = int_to_ptr.vmem [resolvable:$true] %s442
          %448 = dma.hbm_to_vmem [thread:$0]  %s441, 1536, %s443, %s431, 384, 384, 24
        $region60: #{tpu_custom_call.1} parent=55 // pred_fallthru
          _
      $region56: #{tpu_custom_call.1} parent=5 // pred_fallthru
        _
      %p449 = scmp.le.s32.totalorder 1, %s28
      %p450 = scmp.lt.s32.totalorder %s28, 3
      %p451 = pnand %p449, %p450
      %p452 = pneg %p451
      // Predicated region
      $region61: #{tpu_custom_call.1} parent=5 // pred_check
        _
      $region62: #{tpu_custom_call.1} parent=5 // pred_check_branch
        %454 = sbr.rel (%p451) target = $region64
      $region63: #{tpu_custom_call.1} parent=5 // pred_region
        %s455 = ssub.s32 %s28, 1
        %s456 = sand.u32 %s41, 1
        %s457 = scalar_lea.sflag [#allocation3], %s456
        %s458 = sand.u32 %s41, 1
        %s459 = smul.addr %s458, 96
        %s460 = scalar_lea.vmem [#allocation2], %s459
        // Predicated region
        $region65: #{tpu_custom_call.1} parent=63 // pred_check
          %p461 = pneg %p54
        $region66: #{tpu_custom_call.1} parent=63 // pred_check_branch
          %463 = sbr.rel (%p461) target = $region68
        $region67: #{tpu_custom_call.1} parent=63 // pred_region
          %464 = dma.done %s457, 1536
        $region68: #{tpu_custom_call.1} parent=63 // pred_fallthru
          _
        // Predicated region
        $region69: #{tpu_custom_call.1} parent=63 // pred_check
          %p465 = pneg %p75
        $region70: #{tpu_custom_call.1} parent=63 // pred_check_branch
          %467 = sbr.rel (%p465) target = $region72
        $region71: #{tpu_custom_call.1} parent=63 // pred_region
          %468 = dma.done [#allocation6], 6144
        $region72: #{tpu_custom_call.1} parent=63 // pred_fallthru
          _
        // Predicated region
        $region73: #{tpu_custom_call.1} parent=63 // pred_check
          %p469 = pneg %p96
        $region74: #{tpu_custom_call.1} parent=63 // pred_check_branch
          %471 = sbr.rel (%p469) target = $region76
        $region75: #{tpu_custom_call.1} parent=63 // pred_region
          %472 = dma.done [#allocation6], 16
        $region76: #{tpu_custom_call.1} parent=63 // pred_fallthru
          _
        // Predicated region
        $region77: #{tpu_custom_call.1} parent=63 // pred_check
          %p473 = pneg %p117
        $region78: #{tpu_custom_call.1} parent=63 // pred_check_branch
          %475 = sbr.rel (%p473) target = $region80
        $region79: #{tpu_custom_call.1} parent=63 // pred_region
          %476 = dma.done [#allocation9], 2048
        $region80: #{tpu_custom_call.1} parent=63 // pred_fallthru
          _
        // Predicated region
        $region81: #{tpu_custom_call.1} parent=63 // pred_check
          %p477 = pneg %p138
        $region82: #{tpu_custom_call.1} parent=63 // pred_check_branch
          %479 = sbr.rel (%p477) target = $region84
        $region83: #{tpu_custom_call.1} parent=63 // pred_region
          %480 = dma.done [#allocation9], 32
        $region84: #{tpu_custom_call.1} parent=63 // pred_fallthru
          _
        // Predicated region
        $region85: #{tpu_custom_call.1} parent=63 // pred_check
          %p481 = pneg %p159
        $region86: #{tpu_custom_call.1} parent=63 // pred_check_branch
          %483 = sbr.rel (%p481) target = $region88
        $region87: #{tpu_custom_call.1} parent=63 // pred_region
          %484 = dma.done [#allocation12], 2048
        $region88: #{tpu_custom_call.1} parent=63 // pred_fallthru
          _
        // Predicated region
        $region89: #{tpu_custom_call.1} parent=63 // pred_check
          %p485 = pneg %p180
        $region90: #{tpu_custom_call.1} parent=63 // pred_check_branch
          %487 = sbr.rel (%p485) target = $region92
        $region91: #{tpu_custom_call.1} parent=63 // pred_region
          %488 = dma.done [#allocation12], 16
        $region92: #{tpu_custom_call.1} parent=63 // pred_fallthru
          _
        // Predicated region
        $region93: #{tpu_custom_call.1} parent=63 // pred_check
          %p489 = pneg %p201
        $region94: #{tpu_custom_call.1} parent=63 // pred_check_branch
          %491 = sbr.rel (%p489) target = $region96
        $region95: #{tpu_custom_call.1} parent=63 // pred_region
          %492 = dma.done [#allocation15], 16
        $region96: #{tpu_custom_call.1} parent=63 // pred_fallthru
          _
        // Predicated region
        $region97: #{tpu_custom_call.1} parent=63 // pred_check
          %p493 = pneg %p222
        $region98: #{tpu_custom_call.1} parent=63 // pred_check_branch
          %495 = sbr.rel (%p493) target = $region100
        $region99: #{tpu_custom_call.1} parent=63 // pred_region
          %496 = dma.done [#allocation15], 16
        $region100: #{tpu_custom_call.1} parent=63 // pred_fallthru
          _
        // Predicated region
        $region101: #{tpu_custom_call.1} parent=63 // pred_check
          %p497 = pneg %p243
        $region102: #{tpu_custom_call.1} parent=63 // pred_check_branch
          %499 = sbr.rel (%p497) target = $region104
        $region103: #{tpu_custom_call.1} parent=63 // pred_region
          %500 = dma.done [#allocation18], 1024
        $region104: #{tpu_custom_call.1} parent=63 // pred_fallthru
          _
        // Predicated region
        $region105: #{tpu_custom_call.1} parent=63 // pred_check
          %p501 = pneg %p264
        $region106: #{tpu_custom_call.1} parent=63 // pred_check_branch
          %503 = sbr.rel (%p501) target = $region108
        $region107: #{tpu_custom_call.1} parent=63 // pred_region
          %504 = dma.done [#allocation18], 16
        $region108: #{tpu_custom_call.1} parent=63 // pred_fallthru
          _
        %s505 = sand.u32 %s41, 1
        %s506 = scalar_lea.sflag [#allocation3], %s505
        %s507 = sand.u32 %s41, 1
        %s508 = smul.addr %s507, 96
        %s509 = scalar_lea.vmem [#allocation2], %s508
        %p510 = pneg %p54
        %p511 = pneg %p51
        %p512 = pneg %p75
        %p513 = pneg %p72
        %p514 = pneg %p96
        %p515 = pneg %p93
        %p516 = pneg %p117
        %p517 = pneg %p114
        %p518 = pneg %p138
        %p519 = pneg %p135
        %p520 = pneg %p159
        %p521 = pneg %p156
        %p522 = pneg %p180
        %p523 = pneg %p177
        %p524 = pneg %p201
        %p525 = pneg %p198
        %p526 = pneg %p222
        %p527 = pneg %p219
        %p528 = pneg %p243
        %p529 = pneg %p240
        %p530 = pneg %p264
        %p531 = pneg %p261
        %p532 = pneg %p290
        %p533 = pneg %p287
        %s534 = sand.u32 %s277, 1
        %s535 = scalar_lea.sflag [#allocation4], %s534
        %s536 = sand.u32 %s277, 1
        %s537 = smul.addr %s536, 32
        %s538 = scalar_lea.vmem [#allocation20], %s537
        %s539 = smul.u32 4, %s33
        %s540 = smul.u32 4, %s33
        %v542 = vld [vmem:[%s460] sm:$0xff]
        %v543 = vld [vmem:[%s460 + $0x8] sm:$0xff]
        %v544 = vld [vmem:[%s460 + $0x10] sm:$0xff]
        %v545 = vld [vmem:[%s460 + $0x18] sm:$0xff]
        %v546 = vld [vmem:[%s460 + $0x20] sm:$0xff]
        %v547 = vld [vmem:[%s460 + $0x28] sm:$0xff]
        %v548 = vld [vmem:[%s460 + $0x30] sm:$0xff]
        %v549 = vld [vmem:[%s460 + $0x38] sm:$0xff]
        %v550 = vld [vmem:[%s460 + $0x40] sm:$0xff]
        %v551 = vld [vmem:[%s460 + $0x48] sm:$0xff]
        %v552 = vld [vmem:[%s460 + $0x50] sm:$0xff]
        %v553 = vld [vmem:[%s460 + $0x58] sm:$0xff]
        %v554 = vld [vmem:[#allocation5] sm:$0xf]
        %v555 = vld [vmem:[#allocation5 + $0x4] sm:$0xf]
        %v556 = vld [vmem:[#allocation5 + $0x8] sm:$0xf]
        %v557 = vld [vmem:[#allocation5 + $0xc] sm:$0xf]
        %v558 = vld [vmem:[#allocation5 + $0x10] sm:$0xf]
        %v559 = vld [vmem:[#allocation5 + $0x14] sm:$0xf]
        %v560 = vld [vmem:[#allocation5 + $0x18] sm:$0xf]
        %v561 = vld [vmem:[#allocation5 + $0x1c] sm:$0xf]
        %v562 = vld [vmem:[#allocation5 + $0x20] sm:$0xf]
        %v563 = vld [vmem:[#allocation5 + $0x24] sm:$0xf]
        %v564 = vld [vmem:[#allocation5 + $0x28] sm:$0xf]
        %v565 = vld [vmem:[#allocation5 + $0x2c] sm:$0xf]
        %v566 = vld [vmem:[#allocation5 + $0x30] sm:$0xf]
        %v567 = vld [vmem:[#allocation5 + $0x34] sm:$0xf]
        %v568 = vld [vmem:[#allocation5 + $0x38] sm:$0xf]
        %v569 = vld [vmem:[#allocation5 + $0x3c] sm:$0xf]
        %v570 = vld [vmem:[#allocation5 + $0x40] sm:$0xf]
        %v571 = vld [vmem:[#allocation5 + $0x44] sm:$0xf]
        %v572 = vld [vmem:[#allocation5 + $0x48] sm:$0xf]
        %v573 = vld [vmem:[#allocation5 + $0x4c] sm:$0xf]
        %v574 = vld [vmem:[#allocation5 + $0x50] sm:$0xf]
        %v575 = vld [vmem:[#allocation5 + $0x54] sm:$0xf]
        %v576 = vld [vmem:[#allocation5 + $0x58] sm:$0xf]
        %v577 = vld [vmem:[#allocation5 + $0x5c] sm:$0xf]
        %v578 = vld [vmem:[#allocation5 + $0x60] sm:$0xf]
        %v579 = vld [vmem:[#allocation5 + $0x64] sm:$0xf]
        %v580 = vld [vmem:[#allocation5 + $0x68] sm:$0xf]
        %v581 = vld [vmem:[#allocation5 + $0x6c] sm:$0xf]
        %v582 = vld [vmem:[#allocation5 + $0x70] sm:$0xf]
        %v583 = vld [vmem:[#allocation5 + $0x74] sm:$0xf]
        %v584 = vld [vmem:[#allocation5 + $0x78] sm:$0xf]
        %v585 = vld [vmem:[#allocation5 + $0x7c] sm:$0xf]
        %v586 = vld [vmem:[#allocation5 + $0x80] sm:$0xf]
        %v587 = vld [vmem:[#allocation5 + $0x84] sm:$0xf]
        %v588 = vld [vmem:[#allocation5 + $0x88] sm:$0xf]
        %v589 = vld [vmem:[#allocation5 + $0x8c] sm:$0xf]
        %v590 = vld [vmem:[#allocation5 + $0x90] sm:$0xf]
        %v591 = vld [vmem:[#allocation5 + $0x94] sm:$0xf]
        %v592 = vld [vmem:[#allocation5 + $0x98] sm:$0xf]
        %v593 = vld [vmem:[#allocation5 + $0x9c] sm:$0xf]
        %v594 = vld [vmem:[#allocation5 + $0xa0] sm:$0xf]
        %v595 = vld [vmem:[#allocation5 + $0xa4] sm:$0xf]
        %v596 = vld [vmem:[#allocation5 + $0xa8] sm:$0xf]
        %v597 = vld [vmem:[#allocation5 + $0xac] sm:$0xf]
        %v598 = vld [vmem:[#allocation5 + $0xb0] sm:$0xf]
        %v599 = vld [vmem:[#allocation5 + $0xb4] sm:$0xf]
        %v600 = vld [vmem:[#allocation5 + $0xb8] sm:$0xf]
        %v601 = vld [vmem:[#allocation5 + $0xbc] sm:$0xf]
        %v602 = vld [vmem:[#allocation5 + $0xc0] sm:$0xf]
        %v603 = vld [vmem:[#allocation5 + $0xc4] sm:$0xf]
        %v604 = vld [vmem:[#allocation5 + $0xc8] sm:$0xf]
        %v605 = vld [vmem:[#allocation5 + $0xcc] sm:$0xf]
        %v606 = vld [vmem:[#allocation5 + $0xd0] sm:$0xf]
        %v607 = vld [vmem:[#allocation5 + $0xd4] sm:$0xf]
        %v608 = vld [vmem:[#allocation5 + $0xd8] sm:$0xf]
        %v609 = vld [vmem:[#allocation5 + $0xdc] sm:$0xf]
        %v610 = vld [vmem:[#allocation5 + $0xe0] sm:$0xf]
        %v611 = vld [vmem:[#allocation5 + $0xe4] sm:$0xf]
        %v612 = vld [vmem:[#allocation5 + $0xe8] sm:$0xf]
        %v613 = vld [vmem:[#allocation5 + $0xec] sm:$0xf]
        %v614 = vld [vmem:[#allocation5 + $0xf0] sm:$0xf]
        %v615 = vld [vmem:[#allocation5 + $0xf4] sm:$0xf]
        %v616 = vld [vmem:[#allocation5 + $0xf8] sm:$0xf]
        %v617 = vld [vmem:[#allocation5 + $0xfc] sm:$0xf]
        %v618 = vld [vmem:[#allocation5 + $0x100] sm:$0xf]
        %v619 = vld [vmem:[#allocation5 + $0x104] sm:$0xf]
        %v620 = vld [vmem:[#allocation5 + $0x108] sm:$0xf]
        %v621 = vld [vmem:[#allocation5 + $0x10c] sm:$0xf]
        %v622 = vld [vmem:[#allocation5 + $0x110] sm:$0xf]
        %v623 = vld [vmem:[#allocation5 + $0x114] sm:$0xf]
        %v624 = vld [vmem:[#allocation5 + $0x118] sm:$0xf]
        %v625 = vld [vmem:[#allocation5 + $0x11c] sm:$0xf]
        %v626 = vld [vmem:[#allocation5 + $0x120] sm:$0xf]
        %v627 = vld [vmem:[#allocation5 + $0x124] sm:$0xf]
        %v628 = vld [vmem:[#allocation5 + $0x128] sm:$0xf]
        %v629 = vld [vmem:[#allocation5 + $0x12c] sm:$0xf]
        %v630 = vld [vmem:[#allocation5 + $0x130] sm:$0xf]
        %v631 = vld [vmem:[#allocation5 + $0x134] sm:$0xf]
        %v632 = vld [vmem:[#allocation5 + $0x138] sm:$0xf]
        %v633 = vld [vmem:[#allocation5 + $0x13c] sm:$0xf]
        %v634 = vld [vmem:[#allocation5 + $0x140] sm:$0xf]
        %v635 = vld [vmem:[#allocation5 + $0x144] sm:$0xf]
        %v636 = vld [vmem:[#allocation5 + $0x148] sm:$0xf]
        %v637 = vld [vmem:[#allocation5 + $0x14c] sm:$0xf]
        %v638 = vld [vmem:[#allocation5 + $0x150] sm:$0xf]
        %v639 = vld [vmem:[#allocation5 + $0x154] sm:$0xf]
        %v640 = vld [vmem:[#allocation5 + $0x158] sm:$0xf]
        %v641 = vld [vmem:[#allocation5 + $0x15c] sm:$0xf]
        %v642 = vld [vmem:[#allocation5 + $0x160] sm:$0xf]
        %v643 = vld [vmem:[#allocation5 + $0x164] sm:$0xf]
        %v644 = vld [vmem:[#allocation5 + $0x168] sm:$0xf]
        %v645 = vld [vmem:[#allocation5 + $0x16c] sm:$0xf]
        %v646 = vld [vmem:[#allocation5 + $0x170] sm:$0xf]
        %v647 = vld [vmem:[#allocation5 + $0x174] sm:$0xf]
        %v648 = vld [vmem:[#allocation5 + $0x178] sm:$0xf]
        %v649 = vld [vmem:[#allocation5 + $0x17c] sm:$0xf]
        %v650 = vld [vmem:[#allocation7] sm:$0x1]
        %v652 = vlaneseq
        %v653 = vshrl.u32 %v652, 7
        %v654 = vsub.s32 0, %v653
        %v655 = vrot.slane %v650, %v654
        %v669 = vunpack.c.l.b16 %v542
        %v670 = vunpack.c.h.b16 %v542
        %v671 = vunpack.c.l.b16 %v543
        %v672 = vunpack.c.h.b16 %v543
        %v673 = vunpack.c.l.b16 %v544
        %v674 = vunpack.c.h.b16 %v544
        %v675 = vunpack.c.l.b16 %v545
        %v676 = vunpack.c.h.b16 %v545
        %v677 = vunpack.c.l.b16 %v546
        %v678 = vunpack.c.h.b16 %v546
        %v679 = vunpack.c.l.b16 %v547
        %v680 = vunpack.c.h.b16 %v547
        %v681 = vunpack.c.l.b16 %v548
        %v682 = vunpack.c.h.b16 %v548
        %v683 = vunpack.c.l.b16 %v549
        %v684 = vunpack.c.h.b16 %v549
        %v685 = vunpack.c.l.b16 %v550
        %v686 = vunpack.c.h.b16 %v550
        %v687 = vunpack.c.l.b16 %v551
        %v688 = vunpack.c.h.b16 %v551
        %v689 = vunpack.c.l.b16 %v552
        %v690 = vunpack.c.h.b16 %v552
        %v691 = vunpack.c.l.b16 %v553
        %v692 = vunpack.c.h.b16 %v553
        %v693 = vpack.c.b16 %v675, %v669
        %v694 = vpack.c.b16 %v676, %v670
        %v695 = vpack.c.b16 %v677, %v671
        %v696 = vpack.c.b16 %v678, %v672
        %v697 = vpack.c.b16 %v679, %v673
        %v698 = vpack.c.b16 %v680, %v674
        %v699 = vpack.c.b16 %v687, %v681
        %v700 = vpack.c.b16 %v688, %v682
        %v701 = vpack.c.b16 %v689, %v683
        %v702 = vpack.c.b16 %v690, %v684
        %v703 = vpack.c.b16 %v691, %v685
        %v704 = vpack.c.b16 %v692, %v686
        %v813 = vunpack.c.l.b16 %v554
        %v814 = vunpack.c.l.b16 %v555
        %v815 = vunpack.c.l.b16 %v556
        %v816 = vunpack.c.l.b16 %v557
        %v817 = vunpack.c.l.b16 %v558
        %v818 = vunpack.c.l.b16 %v559
        %v819 = vunpack.c.l.b16 %v560
        %v820 = vunpack.c.l.b16 %v561
        %v821 = vunpack.c.l.b16 %v562
        %v822 = vunpack.c.l.b16 %v563
        %v823 = vunpack.c.l.b16 %v564
        %v824 = vunpack.c.l.b16 %v565
        %v825 = vunpack.c.l.b16 %v566
        %v826 = vunpack.c.l.b16 %v567
        %v827 = vunpack.c.l.b16 %v568
        %v828 = vunpack.c.l.b16 %v569
        %v829 = vunpack.c.l.b16 %v570
        %v830 = vunpack.c.l.b16 %v571
        %v831 = vunpack.c.l.b16 %v572
        %v832 = vunpack.c.l.b16 %v573
        %v833 = vunpack.c.l.b16 %v574
        %v834 = vunpack.c.l.b16 %v575
        %v835 = vunpack.c.l.b16 %v576
        %v836 = vunpack.c.l.b16 %v577
        %v837 = vunpack.c.l.b16 %v578
        %v838 = vunpack.c.l.b16 %v579
        %v839 = vunpack.c.l.b16 %v580
        %v840 = vunpack.c.l.b16 %v581
        %v841 = vunpack.c.l.b16 %v582
        %v842 = vunpack.c.l.b16 %v583
        %v843 = vunpack.c.l.b16 %v584
        %v844 = vunpack.c.l.b16 %v585
        %v845 = vunpack.c.l.b16 %v586
        %v846 = vunpack.c.l.b16 %v587
        %v847 = vunpack.c.l.b16 %v588
        %v848 = vunpack.c.l.b16 %v589
        %v849 = vunpack.c.l.b16 %v590
        %v850 = vunpack.c.l.b16 %v591
        %v851 = vunpack.c.l.b16 %v592
        %v852 = vunpack.c.l.b16 %v593
        %v853 = vunpack.c.l.b16 %v594
        %v854 = vunpack.c.l.b16 %v595
        %v855 = vunpack.c.l.b16 %v596
        %v856 = vunpack.c.l.b16 %v597
        %v857 = vunpack.c.l.b16 %v598
        %v858 = vunpack.c.l.b16 %v599
        %v859 = vunpack.c.l.b16 %v600
        %v860 = vunpack.c.l.b16 %v601
        %v861 = vunpack.c.l.b16 %v602
        %v862 = vunpack.c.l.b16 %v603
        %v863 = vunpack.c.l.b16 %v604
        %v864 = vunpack.c.l.b16 %v605
        %v865 = vunpack.c.l.b16 %v606
        %v866 = vunpack.c.l.b16 %v607
        %v867 = vunpack.c.l.b16 %v608
        %v868 = vunpack.c.l.b16 %v609
        %v869 = vunpack.c.l.b16 %v610
        %v870 = vunpack.c.l.b16 %v611
        %v871 = vunpack.c.l.b16 %v612
        %v872 = vunpack.c.l.b16 %v613
        %v873 = vunpack.c.l.b16 %v614
        %v874 = vunpack.c.l.b16 %v615
        %v875 = vunpack.c.l.b16 %v616
        %v876 = vunpack.c.l.b16 %v617
        %v877 = vunpack.c.l.b16 %v618
        %v878 = vunpack.c.l.b16 %v619
        %v879 = vunpack.c.l.b16 %v620
        %v880 = vunpack.c.l.b16 %v621
        %v881 = vunpack.c.l.b16 %v622
        %v882 = vunpack.c.l.b16 %v623
        %v883 = vunpack.c.l.b16 %v624
        %v884 = vunpack.c.l.b16 %v625
        %v885 = vunpack.c.l.b16 %v626
        %v886 = vunpack.c.l.b16 %v627
        %v887 = vunpack.c.l.b16 %v628
        %v888 = vunpack.c.l.b16 %v629
        %v889 = vunpack.c.l.b16 %v630
        %v890 = vunpack.c.l.b16 %v631
        %v891 = vunpack.c.l.b16 %v632
        %v892 = vunpack.c.l.b16 %v633
        %v893 = vunpack.c.l.b16 %v634
        %v894 = vunpack.c.l.b16 %v635
        %v895 = vunpack.c.l.b16 %v636
        %v896 = vunpack.c.l.b16 %v637
        %v897 = vunpack.c.l.b16 %v638
        %v898 = vunpack.c.l.b16 %v639
        %v899 = vunpack.c.l.b16 %v640
        %v900 = vunpack.c.l.b16 %v641
        %v901 = vunpack.c.l.b16 %v642
        %v902 = vunpack.c.l.b16 %v643
        %v903 = vunpack.c.l.b16 %v644
        %v904 = vunpack.c.l.b16 %v645
        %v905 = vunpack.c.l.b16 %v646
        %v906 = vunpack.c.l.b16 %v647
        %v907 = vunpack.c.l.b16 %v648
        %v908 = vunpack.c.l.b16 %v649
        %v909 = vpack.c.b16 %v814, %v813
        %v910 = vpack.c.b16 %v816, %v815
        %v911 = vpack.c.b16 %v818, %v817
        %v912 = vpack.c.b16 %v820, %v819
        %v913 = vpack.c.b16 %v822, %v821
        %v914 = vpack.c.b16 %v824, %v823
        %v915 = vpack.c.b16 %v826, %v825
        %v916 = vpack.c.b16 %v828, %v827
        %v917 = vpack.c.b16 %v830, %v829
        %v918 = vpack.c.b16 %v832, %v831
        %v919 = vpack.c.b16 %v834, %v833
        %v920 = vpack.c.b16 %v836, %v835
        %v921 = vpack.c.b16 %v838, %v837
        %v922 = vpack.c.b16 %v840, %v839
        %v923 = vpack.c.b16 %v842, %v841
        %v924 = vpack.c.b16 %v844, %v843
        %v925 = vpack.c.b16 %v846, %v845
        %v926 = vpack.c.b16 %v848, %v847
        %v927 = vpack.c.b16 %v850, %v849
        %v928 = vpack.c.b16 %v852, %v851
        %v929 = vpack.c.b16 %v854, %v853
        %v930 = vpack.c.b16 %v856, %v855
        %v931 = vpack.c.b16 %v858, %v857
        %v932 = vpack.c.b16 %v860, %v859
        %v933 = vpack.c.b16 %v862, %v861
        %v934 = vpack.c.b16 %v864, %v863
        %v935 = vpack.c.b16 %v866, %v865
        %v936 = vpack.c.b16 %v868, %v867
        %v937 = vpack.c.b16 %v870, %v869
        %v938 = vpack.c.b16 %v872, %v871
        %v939 = vpack.c.b16 %v874, %v873
        %v940 = vpack.c.b16 %v876, %v875
        %v941 = vpack.c.b16 %v878, %v877
        %v942 = vpack.c.b16 %v880, %v879
        %v943 = vpack.c.b16 %v882, %v881
        %v944 = vpack.c.b16 %v884, %v883
        %v945 = vpack.c.b16 %v886, %v885
        %v946 = vpack.c.b16 %v888, %v887
        %v947 = vpack.c.b16 %v890, %v889
        %v948 = vpack.c.b16 %v892, %v891
        %v949 = vpack.c.b16 %v894, %v893
        %v950 = vpack.c.b16 %v896, %v895
        %v951 = vpack.c.b16 %v898, %v897
        %v952 = vpack.c.b16 %v900, %v899
        %v953 = vpack.c.b16 %v902, %v901
        %v954 = vpack.c.b16 %v904, %v903
        %v955 = vpack.c.b16 %v906, %v905
        %v956 = vpack.c.b16 %v908, %v907
        %1005 = vmatprep.subr.bf16.mxu0 0
        %1006 = vmatpush1.bf16.msra.mxu0 %v909
        %1007 = vmatprep.subr.bf16.mxu0 0
        %1008 = vmatpush1.bf16.msra.mxu0 %v910
        %1009 = vmatprep.subr.bf16.mxu0 0
        %1010 = vmatpush1.bf16.msra.mxu0 %v911
        %1011 = vmatprep.subr.bf16.mxu0 0
        %1012 = vmatpush1.bf16.msra.mxu0 %v912
        %1013 = vmatprep.subr.bf16.mxu0 0
        %1014 = vmatpush1.bf16.msra.mxu0 %v913
        %1015 = vmatprep.subr.bf16.mxu0 0
        %1016 = vmatpush1.bf16.msra.mxu0 %v914
        %1017 = vmatprep.subr.bf16.mxu0 0
        %1018 = vmatpush1.bf16.msra.mxu0 %v915
        %1019 = vmatprep.subr.bf16.mxu0 0
        %1020 = vmatpush1.bf16.msra.mxu0 %v916
        %1021 = vmatprep.subr.bf16.mxu0 0
        %1022 = vmatpush1.bf16.msra.mxu0 %v917
        %1023 = vmatprep.subr.bf16.mxu0 0
        %1024 = vmatpush1.bf16.msra.mxu0 %v918
        %1025 = vmatprep.subr.bf16.mxu0 0
        %1026 = vmatpush1.bf16.msra.mxu0 %v919
        %1027 = vmatprep.subr.bf16.mxu0 0
        %1028 = vmatpush1.bf16.msra.mxu0 %v920
        %1029 = vmatprep.subr.bf16.mxu0 0
        %1030 = vmatpush1.bf16.msra.mxu0 %v921
        %1031 = vmatprep.subr.bf16.mxu0 0
        %1032 = vmatpush1.bf16.msra.mxu0 %v922
        %1033 = vmatprep.subr.bf16.mxu0 0
        %1034 = vmatpush1.bf16.msra.mxu0 %v923
        %1035 = vmatprep.subr.bf16.mxu0 0
        %1036 = vmatpush1.bf16.msra.mxu0 %v924
        %1037 = vmatprep.mubr.bf16.mxu0 %v694
        %1038 = vmatmul.mubr.bf16.gmra.mrb[0].mxu0 %v693
        %v1039 = vpop.f32.mrb[0].mxu0
        %v1040 = vadd.f32 %v655, %v1039
        %v1041 = vpop.f32.mrb[0].mxu0
        %v1042 = vpop.f32.mrb[0].mxu0
        %v1043 = vadd.f32 %v655, %v1042
        %v1044 = vpop.f32.mrb[0].mxu0
        %1045 = vmatprep.mubr.bf16.mxu0 %v700
        %1046 = vmatmul.mubr.bf16.gmra.mrb[0].mxu0 %v699
        %v1047 = vpop.f32.mrb[0].mxu0
        %v1048 = vadd.f32 %v655, %v1047
        %v1049 = vpop.f32.mrb[0].mxu0
        %v1050 = vpop.f32.mrb[0].mxu0
        %v1051 = vadd.f32 %v655, %v1050
        %v1052 = vpop.f32.mrb[0].mxu0
        %1053 = vdwg.mxu0
        %1054 = vmatprep.subr.bf16.mxu0 0
        %1055 = vmatpush1.bf16.msra.mxu0 %v925
        %1056 = vmatprep.subr.bf16.mxu0 0
        %1057 = vmatpush1.bf16.msra.mxu0 %v926
        %1058 = vmatprep.subr.bf16.mxu0 0
        %1059 = vmatpush1.bf16.msra.mxu0 %v927
        %1060 = vmatprep.subr.bf16.mxu0 0
        %1061 = vmatpush1.bf16.msra.mxu0 %v928
        %1062 = vmatprep.subr.bf16.mxu0 0
        %1063 = vmatpush1.bf16.msra.mxu0 %v929
        %1064 = vmatprep.subr.bf16.mxu0 0
        %1065 = vmatpush1.bf16.msra.mxu0 %v930
        %1066 = vmatprep.subr.bf16.mxu0 0
        %1067 = vmatpush1.bf16.msra.mxu0 %v931
        %1068 = vmatprep.subr.bf16.mxu0 0
        %1069 = vmatpush1.bf16.msra.mxu0 %v932
        %1070 = vmatprep.subr.bf16.mxu0 0
        %1071 = vmatpush1.bf16.msra.mxu0 %v933
        %1072 = vmatprep.subr.bf16.mxu0 0
        %1073 = vmatpush1.bf16.msra.mxu0 %v934
        %1074 = vmatprep.subr.bf16.mxu0 0
        %1075 = vmatpush1.bf16.msra.mxu0 %v935
        %1076 = vmatprep.subr.bf16.mxu0 0
        %1077 = vmatpush1.bf16.msra.mxu0 %v936
        %1078 = vmatprep.subr.bf16.mxu0 0
        %1079 = vmatpush1.bf16.msra.mxu0 %v937
        %1080 = vmatprep.subr.bf16.mxu0 0
        %1081 = vmatpush1.bf16.msra.mxu0 %v938
        %1082 = vmatprep.subr.bf16.mxu0 0
        %1083 = vmatpush1.bf16.msra.mxu0 %v939
        %1084 = vmatprep.subr.bf16.mxu0 0
        %1085 = vmatpush1.bf16.msra.mxu0 %v940
        %1086 = vmatprep.mubr.bf16.mxu0 %v696
        %1087 = vmatmul.mubr.bf16.gmra.mrb[0].mxu0 %v695
        %v1088 = vpop.f32.mrb[0].mxu0
        %v1089 = vadd.f32 %v1040, %v1088
        %v1090 = vpop.f32.mrb[0].mxu0
        %v1091 = vpop.f32.mrb[0].mxu0
        %v1092 = vadd.f32 %v1043, %v1091
        %v1093 = vpop.f32.mrb[0].mxu0
        %1094 = vmatprep.mubr.bf16.mxu0 %v702
        %1095 = vmatmul.mubr.bf16.gmra.mrb[0].mxu0 %v701
        %v1096 = vpop.f32.mrb[0].mxu0
        %v1097 = vadd.f32 %v1048, %v1096
        %v1098 = vpop.f32.mrb[0].mxu0
        %v1099 = vpop.f32.mrb[0].mxu0
        %v1100 = vadd.f32 %v1051, %v1099
        %v1101 = vpop.f32.mrb[0].mxu0
        %1102 = vdwg.mxu0
        %1103 = vmatprep.subr.bf16.mxu0 0
        %1104 = vmatpush1.bf16.msra.mxu0 %v941
        %1105 = vmatprep.subr.bf16.mxu0 0
        %1106 = vmatpush1.bf16.msra.mxu0 %v942
        %1107 = vmatprep.subr.bf16.mxu0 0
        %1108 = vmatpush1.bf16.msra.mxu0 %v943
        %1109 = vmatprep.subr.bf16.mxu0 0
        %1110 = vmatpush1.bf16.msra.mxu0 %v944
        %1111 = vmatprep.subr.bf16.mxu0 0
        %1112 = vmatpush1.bf16.msra.mxu0 %v945
        %1113 = vmatprep.subr.bf16.mxu0 0
        %1114 = vmatpush1.bf16.msra.mxu0 %v946
        %1115 = vmatprep.subr.bf16.mxu0 0
        %1116 = vmatpush1.bf16.msra.mxu0 %v947
        %1117 = vmatprep.subr.bf16.mxu0 0
        %1118 = vmatpush1.bf16.msra.mxu0 %v948
        %1119 = vmatprep.subr.bf16.mxu0 0
        %1120 = vmatpush1.bf16.msra.mxu0 %v949
        %1121 = vmatprep.subr.bf16.mxu0 0
        %1122 = vmatpush1.bf16.msra.mxu0 %v950
        %1123 = vmatprep.subr.bf16.mxu0 0
        %1124 = vmatpush1.bf16.msra.mxu0 %v951
        %1125 = vmatprep.subr.bf16.mxu0 0
        %1126 = vmatpush1.bf16.msra.mxu0 %v952
        %1127 = vmatprep.subr.bf16.mxu0 0
        %1128 = vmatpush1.bf16.msra.mxu0 %v953
        %1129 = vmatprep.subr.bf16.mxu0 0
        %1130 = vmatpush1.bf16.msra.mxu0 %v954
        %1131 = vmatprep.subr.bf16.mxu0 0
        %1132 = vmatpush1.bf16.msra.mxu0 %v955
        %1133 = vmatprep.subr.bf16.mxu0 0
        %1134 = vmatpush1.bf16.msra.mxu0 %v956
        %1135 = vmatprep.mubr.bf16.mxu0 %v698
        %1136 = vmatmul.mubr.bf16.gmra.mrb[0].mxu0 %v697
        %v1137 = vpop.f32.mrb[0].mxu0
        %v1138 = vadd.f32 %v1089, %v1137
        %v1139 = vpop.f32.mrb[0].mxu0
        %v1140 = vpop.f32.mrb[0].mxu0
        %v1141 = vadd.f32 %v1092, %v1140
        %v1142 = vpop.f32.mrb[0].mxu0
        %1143 = vmatprep.mubr.bf16.mxu0 %v704
        %1144 = vmatmul.mubr.bf16.gmra.mrb[0].mxu0 %v703
        %v1145 = vpop.f32.mrb[0].mxu0
        %v1146 = vadd.f32 %v1097, %v1145
        %v1147 = vpop.f32.mrb[0].mxu0
        %v1148 = vpop.f32.mrb[0].mxu0
        %v1149 = vadd.f32 %v1100, %v1148
        %v1150 = vpop.f32.mrb[0].mxu0
        %1151 = vdwg.mxu0
        %v1152 = vpack.c.bf16 %v1141, %v1138
        %v1153 = vpack.c.bf16 %v1149, %v1146
        %v1154 = vld [vmem:[#allocation8] sm:$0xff]
        %v1155 = vld [vmem:[#allocation8 + $0x8] sm:$0xff]
        %v1156 = vld [vmem:[#allocation8 + $0x10] sm:$0xff]
        %v1157 = vld [vmem:[#allocation8 + $0x18] sm:$0xff]
        %v1158 = vld [vmem:[#allocation8 + $0x20] sm:$0xff]
        %v1159 = vld [vmem:[#allocation8 + $0x28] sm:$0xff]
        %v1160 = vld [vmem:[#allocation8 + $0x30] sm:$0xff]
        %v1161 = vld [vmem:[#allocation8 + $0x38] sm:$0xff]
        %v1162 = vld [vmem:[#allocation8 + $0x40] sm:$0xff]
        %v1163 = vld [vmem:[#allocation8 + $0x48] sm:$0xff]
        %v1164 = vld [vmem:[#allocation8 + $0x50] sm:$0xff]
        %v1165 = vld [vmem:[#allocation8 + $0x58] sm:$0xff]
        %v1166 = vld [vmem:[#allocation8 + $0x60] sm:$0xff]
        %v1167 = vld [vmem:[#allocation8 + $0x68] sm:$0xff]
        %v1168 = vld [vmem:[#allocation8 + $0x70] sm:$0xff]
        %v1169 = vld [vmem:[#allocation8 + $0x78] sm:$0xff]
        %v1170 = vld [vmem:[#allocation10] sm:$0x3]
        %v1172 = vlaneseq
        %v1173 = vshrl.u32 %v1172, 7
        %v1174 = vsub.s32 0, %v1173
        %v1175 = vrot.slane %v1170, %v1174
        %v1176 = vlaneseq
        %v1177 = vshrl.u32 %v1176, 7
        %v1178 = vsub.s32 1, %v1177
        %v1179 = vrot.slane %v1170, %v1178
        %v1198 = vunpack.c.l.b16 %v1154
        %v1199 = vunpack.c.h.b16 %v1154
        %v1200 = vunpack.c.l.b16 %v1155
        %v1201 = vunpack.c.h.b16 %v1155
        %v1202 = vunpack.c.l.b16 %v1156
        %v1203 = vunpack.c.h.b16 %v1156
        %v1204 = vunpack.c.l.b16 %v1157
        %v1205 = vunpack.c.h.b16 %v1157
        %v1206 = vunpack.c.l.b16 %v1158
        %v1207 = vunpack.c.h.b16 %v1158
        %v1208 = vunpack.c.l.b16 %v1159
        %v1209 = vunpack.c.h.b16 %v1159
        %v1210 = vunpack.c.l.b16 %v1160
        %v1211 = vunpack.c.h.b16 %v1160
        %v1212 = vunpack.c.l.b16 %v1161
        %v1213 = vunpack.c.h.b16 %v1161
        %v1214 = vunpack.c.l.b16 %v1162
        %v1215 = vunpack.c.h.b16 %v1162
        %v1216 = vunpack.c.l.b16 %v1163
        %v1217 = vunpack.c.h.b16 %v1163
        %v1218 = vunpack.c.l.b16 %v1164
        %v1219 = vunpack.c.h.b16 %v1164
        %v1220 = vunpack.c.l.b16 %v1165
        %v1221 = vunpack.c.h.b16 %v1165
        %v1222 = vunpack.c.l.b16 %v1166
        %v1223 = vunpack.c.h.b16 %v1166
        %v1224 = vunpack.c.l.b16 %v1167
        %v1225 = vunpack.c.h.b16 %v1167
        %v1226 = vunpack.c.l.b16 %v1168
        %v1227 = vunpack.c.h.b16 %v1168
        %v1228 = vunpack.c.l.b16 %v1169
        %v1229 = vunpack.c.h.b16 %v1169
        %v1230 = vpack.c.b16 %v1200, %v1198
        %v1231 = vpack.c.b16 %v1201, %v1199
        %v1232 = vpack.c.b16 %v1204, %v1202
        %v1233 = vpack.c.b16 %v1205, %v1203
        %v1234 = vpack.c.b16 %v1208, %v1206
        %v1235 = vpack.c.b16 %v1209, %v1207
        %v1236 = vpack.c.b16 %v1212, %v1210
        %v1237 = vpack.c.b16 %v1213, %v1211
        %v1238 = vpack.c.b16 %v1216, %v1214
        %v1239 = vpack.c.b16 %v1217, %v1215
        %v1240 = vpack.c.b16 %v1220, %v1218
        %v1241 = vpack.c.b16 %v1221, %v1219
        %v1242 = vpack.c.b16 %v1224, %v1222
        %v1243 = vpack.c.b16 %v1225, %v1223
        %v1244 = vpack.c.b16 %v1228, %v1226
        %v1245 = vpack.c.b16 %v1229, %v1227
        %1262 = vmatprep.subr.bf16.mxu0 %v1231
        %1263 = vmatpush1.bf16.msra.mxu0 %v1230
        %1264 = vmatprep.subr.bf16.mxu0 %v1233
        %1265 = vmatpush1.bf16.msra.mxu0 %v1232
        %1266 = vmatprep.subr.bf16.mxu0 %v1235
        %1267 = vmatpush1.bf16.msra.mxu0 %v1234
        %1268 = vmatprep.subr.bf16.mxu0 %v1237
        %1269 = vmatpush1.bf16.msra.mxu0 %v1236
        %1270 = vmatprep.subr.bf16.mxu0 %v1239
        %1271 = vmatpush1.bf16.msra.mxu0 %v1238
        %1272 = vmatprep.subr.bf16.mxu0 %v1241
        %1273 = vmatpush1.bf16.msra.mxu0 %v1240
        %1274 = vmatprep.subr.bf16.mxu0 %v1243
        %1275 = vmatpush1.bf16.msra.mxu0 %v1242
        %1276 = vmatprep.subr.bf16.mxu0 %v1245
        %1277 = vmatpush1.bf16.msra.mxu0 %v1244
        %1278 = vmatprep.subr.bf16.mxu0 0
        %1279 = vmatpush1.bf16.msra.mxu0 0
        %1280 = vmatprep.subr.bf16.mxu0 0
        %1281 = vmatpush1.bf16.msra.mxu0 0
        %1282 = vmatprep.subr.bf16.mxu0 0
        %1283 = vmatpush1.bf16.msra.mxu0 0
        %1284 = vmatprep.subr.bf16.mxu0 0
        %1285 = vmatpush1.bf16.msra.mxu0 0
        %1286 = vmatprep.subr.bf16.mxu0 0
        %1287 = vmatpush1.bf16.msra.mxu0 0
        %1288 = vmatprep.subr.bf16.mxu0 0
        %1289 = vmatpush1.bf16.msra.mxu0 0
        %1290 = vmatprep.subr.bf16.mxu0 0
        %1291 = vmatpush1.bf16.msra.mxu0 0
        %1292 = vmatprep.subr.bf16.mxu0 0
        %1293 = vmatpush1.bf16.msra.mxu0 0
        %1294 = vmatprep.mubr.bf16.mxu0 0
        %1295 = vmatmul.mubr.bf16.gmra.mrb[0].mxu0 %v1152
        %v1296 = vpop.f32.mrb[0].mxu0
        %v1297 = vadd.f32 %v1175, %v1296
        %v1298 = vpop.f32.mrb[0].mxu0
        %v1299 = vadd.f32 %v1179, %v1298
        %v1300 = vpop.f32.mrb[0].mxu0
        %v1301 = vadd.f32 %v1175, %v1300
        %v1302 = vpop.f32.mrb[0].mxu0
        %v1303 = vadd.f32 %v1179, %v1302
        %1304 = vmatprep.mubr.bf16.mxu0 0
        %1305 = vmatmul.mubr.bf16.gmra.mrb[0].mxu0 %v1153
        %v1306 = vpop.f32.mrb[0].mxu0
        %v1307 = vadd.f32 %v1175, %v1306
        %v1308 = vpop.f32.mrb[0].mxu0
        %v1309 = vadd.f32 %v1179, %v1308
        %v1310 = vpop.f32.mrb[0].mxu0
        %v1311 = vadd.f32 %v1175, %v1310
        %v1312 = vpop.f32.mrb[0].mxu0
        %v1313 = vadd.f32 %v1179, %v1312
        %1314 = vdwg.mxu0
        %v1315 = vmax.f32 %v1297, 0.0
        %v1316 = vmax.f32 %v1299, 0.0
        %v1317 = vmax.f32 %v1301, 0.0
        %v1318 = vmax.f32 %v1303, 0.0
        %v1319 = vmax.f32 %v1307, 0.0
        %v1320 = vmax.f32 %v1309, 0.0
        %v1321 = vmax.f32 %v1311, 0.0
        %v1322 = vmax.f32 %v1313, 0.0
        %v1323 = vpack.c.bf16 %v1317, %v1315
        %v1324 = vpack.c.bf16 %v1318, %v1316
        %v1325 = vpack.c.bf16 %v1321, %v1319
        %v1326 = vpack.c.bf16 %v1322, %v1320
        %v1327 = vld [vmem:[#allocation11] sm:$0xf]
        %v1328 = vld [vmem:[#allocation11 + $0x4] sm:$0xf]
        %v1329 = vld [vmem:[#allocation11 + $0x8] sm:$0xf]
        %v1330 = vld [vmem:[#allocation11 + $0xc] sm:$0xf]
        %v1331 = vld [vmem:[#allocation11 + $0x10] sm:$0xf]
        %v1332 = vld [vmem:[#allocation11 + $0x14] sm:$0xf]
        %v1333 = vld [vmem:[#allocation11 + $0x18] sm:$0xf]
        %v1334 = vld [vmem:[#allocation11 + $0x1c] sm:$0xf]
        %v1335 = vld [vmem:[#allocation11 + $0x20] sm:$0xf]
        %v1336 = vld [vmem:[#allocation11 + $0x24] sm:$0xf]
        %v1337 = vld [vmem:[#allocation11 + $0x28] sm:$0xf]
        %v1338 = vld [vmem:[#allocation11 + $0x2c] sm:$0xf]
        %v1339 = vld [vmem:[#allocation11 + $0x30] sm:$0xf]
        %v1340 = vld [vmem:[#allocation11 + $0x34] sm:$0xf]
        %v1341 = vld [vmem:[#allocation11 + $0x38] sm:$0xf]
        %v1342 = vld [vmem:[#allocation11 + $0x3c] sm:$0xf]
        %v1343 = vld [vmem:[#allocation11 + $0x40] sm:$0xf]
        %v1344 = vld [vmem:[#allocation11 + $0x44] sm:$0xf]
        %v1345 = vld [vmem:[#allocation11 + $0x48] sm:$0xf]
        %v1346 = vld [vmem:[#allocation11 + $0x4c] sm:$0xf]
        %v1347 = vld [vmem:[#allocation11 + $0x50] sm:$0xf]
        %v1348 = vld [vmem:[#allocation11 + $0x54] sm:$0xf]
        %v1349 = vld [vmem:[#allocation11 + $0x58] sm:$0xf]
        %v1350 = vld [vmem:[#allocation11 + $0x5c] sm:$0xf]
        %v1351 = vld [vmem:[#allocation11 + $0x60] sm:$0xf]
        %v1352 = vld [vmem:[#allocation11 + $0x64] sm:$0xf]
        %v1353 = vld [vmem:[#allocation11 + $0x68] sm:$0xf]
        %v1354 = vld [vmem:[#allocation11 + $0x6c] sm:$0xf]
        %v1355 = vld [vmem:[#allocation11 + $0x70] sm:$0xf]
        %v1356 = vld [vmem:[#allocation11 + $0x74] sm:$0xf]
        %v1357 = vld [vmem:[#allocation11 + $0x78] sm:$0xf]
        %v1358 = vld [vmem:[#allocation11 + $0x7c] sm:$0xf]
        %v1359 = vld [vmem:[#allocation13] sm:$0x1]
        %v1361 = vlaneseq
        %v1362 = vshrl.u32 %v1361, 7
        %v1363 = vsub.s32 0, %v1362
        %v1364 = vrot.slane %v1359, %v1363
        %v1398 = vunpack.c.l.b16 %v1327
        %v1399 = vunpack.c.l.b16 %v1328
        %v1400 = vunpack.c.l.b16 %v1329
        %v1401 = vunpack.c.l.b16 %v1330
        %v1402 = vunpack.c.l.b16 %v1331
        %v1403 = vunpack.c.l.b16 %v1332
        %v1404 = vunpack.c.l.b16 %v1333
        %v1405 = vunpack.c.l.b16 %v1334
        %v1406 = vunpack.c.l.b16 %v1335
        %v1407 = vunpack.c.l.b16 %v1336
        %v1408 = vunpack.c.l.b16 %v1337
        %v1409 = vunpack.c.l.b16 %v1338
        %v1410 = vunpack.c.l.b16 %v1339
        %v1411 = vunpack.c.l.b16 %v1340
        %v1412 = vunpack.c.l.b16 %v1341
        %v1413 = vunpack.c.l.b16 %v1342
        %v1414 = vunpack.c.l.b16 %v1343
        %v1415 = vunpack.c.l.b16 %v1344
        %v1416 = vunpack.c.l.b16 %v1345
        %v1417 = vunpack.c.l.b16 %v1346
        %v1418 = vunpack.c.l.b16 %v1347
        %v1419 = vunpack.c.l.b16 %v1348
        %v1420 = vunpack.c.l.b16 %v1349
        %v1421 = vunpack.c.l.b16 %v1350
        %v1422 = vunpack.c.l.b16 %v1351
        %v1423 = vunpack.c.l.b16 %v1352
        %v1424 = vunpack.c.l.b16 %v1353
        %v1425 = vunpack.c.l.b16 %v1354
        %v1426 = vunpack.c.l.b16 %v1355
        %v1427 = vunpack.c.l.b16 %v1356
        %v1428 = vunpack.c.l.b16 %v1357
        %v1429 = vunpack.c.l.b16 %v1358
        %v1430 = vpack.c.b16 %v1399, %v1398
        %v1431 = vpack.c.b16 %v1401, %v1400
        %v1432 = vpack.c.b16 %v1403, %v1402
        %v1433 = vpack.c.b16 %v1405, %v1404
        %v1434 = vpack.c.b16 %v1407, %v1406
        %v1435 = vpack.c.b16 %v1409, %v1408
        %v1436 = vpack.c.b16 %v1411, %v1410
        %v1437 = vpack.c.b16 %v1413, %v1412
        %v1438 = vpack.c.b16 %v1415, %v1414
        %v1439 = vpack.c.b16 %v1417, %v1416
        %v1440 = vpack.c.b16 %v1419, %v1418
        %v1441 = vpack.c.b16 %v1421, %v1420
        %v1442 = vpack.c.b16 %v1423, %v1422
        %v1443 = vpack.c.b16 %v1425, %v1424
        %v1444 = vpack.c.b16 %v1427, %v1426
        %v1445 = vpack.c.b16 %v1429, %v1428
        %1462 = vmatprep.subr.bf16.mxu0 0
        %1463 = vmatpush1.bf16.msra.mxu0 %v1430
        %1464 = vmatprep.subr.bf16.mxu0 0
        %1465 = vmatpush1.bf16.msra.mxu0 %v1431
        %1466 = vmatprep.subr.bf16.mxu0 0
        %1467 = vmatpush1.bf16.msra.mxu0 %v1432
        %1468 = vmatprep.subr.bf16.mxu0 0
        %1469 = vmatpush1.bf16.msra.mxu0 %v1433
        %1470 = vmatprep.subr.bf16.mxu0 0
        %1471 = vmatpush1.bf16.msra.mxu0 %v1434
        %1472 = vmatprep.subr.bf16.mxu0 0
        %1473 = vmatpush1.bf16.msra.mxu0 %v1435
        %1474 = vmatprep.subr.bf16.mxu0 0
        %1475 = vmatpush1.bf16.msra.mxu0 %v1436
        %1476 = vmatprep.subr.bf16.mxu0 0
        %1477 = vmatpush1.bf16.msra.mxu0 %v1437
        %1478 = vmatprep.subr.bf16.mxu0 0
        %1479 = vmatpush1.bf16.msra.mxu0 %v1438
        %1480 = vmatprep.subr.bf16.mxu0 0
        %1481 = vmatpush1.bf16.msra.mxu0 %v1439
        %1482 = vmatprep.subr.bf16.mxu0 0
        %1483 = vmatpush1.bf16.msra.mxu0 %v1440
        %1484 = vmatprep.subr.bf16.mxu0 0
        %1485 = vmatpush1.bf16.msra.mxu0 %v1441
        %1486 = vmatprep.subr.bf16.mxu0 0
        %1487 = vmatpush1.bf16.msra.mxu0 %v1442
        %1488 = vmatprep.subr.bf16.mxu0 0
        %1489 = vmatpush1.bf16.msra.mxu0 %v1443
        %1490 = vmatprep.subr.bf16.mxu0 0
        %1491 = vmatpush1.bf16.msra.mxu0 %v1444
        %1492 = vmatprep.subr.bf16.mxu0 0
        %1493 = vmatpush1.bf16.msra.mxu0 %v1445
        %1494 = vmatprep.mubr.bf16.mxu0 %v1324
        %1495 = vmatmul.mubr.bf16.gmra.mrb[0].mxu0 %v1323
        %v1496 = vpop.f32.mrb[0].mxu0
        %v1497 = vadd.f32 %v1364, %v1496
        %v1498 = vpop.f32.mrb[0].mxu0
        %v1499 = vpop.f32.mrb[0].mxu0
        %v1500 = vadd.f32 %v1364, %v1499
        %v1501 = vpop.f32.mrb[0].mxu0
        %1502 = vmatprep.mubr.bf16.mxu0 %v1326
        %1503 = vmatmul.mubr.bf16.gmra.mrb[0].mxu0 %v1325
        %v1504 = vpop.f32.mrb[0].mxu0
        %v1505 = vadd.f32 %v1364, %v1504
        %v1506 = vpop.f32.mrb[0].mxu0
        %v1507 = vpop.f32.mrb[0].mxu0
        %v1508 = vadd.f32 %v1364, %v1507
        %v1509 = vpop.f32.mrb[0].mxu0
        %1510 = vdwg.mxu0
        %1511 = vadd.xlane.f32.xlu0 %v1497
        %v1512 = vpop.xlane.xlu0 %1511
        %1513 = vadd.xlane.f32.xlu0 %v1500
        %v1514 = vpop.xlane.xlu0 %1513
        %1515 = vadd.xlane.f32.xlu0 %v1505
        %v1516 = vpop.xlane.xlu0 %1515
        %1517 = vadd.xlane.f32.xlu0 %v1508
        %v1518 = vpop.xlane.xlu0 %1517
        %v1519 = vmul.f32 %v1497, %v1497
        %v1520 = vmul.f32 %v1500, %v1500
        %v1521 = vmul.f32 %v1505, %v1505
        %v1522 = vmul.f32 %v1508, %v1508
        %1523 = vadd.xlane.f32.xlu0 %v1519
        %v1524 = vpop.xlane.xlu0 %1523
        %1525 = vadd.xlane.f32.xlu0 %v1520
        %v1526 = vpop.xlane.xlu0 %1525
        %1527 = vadd.xlane.f32.xlu0 %v1521
        %v1528 = vpop.xlane.xlu0 %1527
        %1529 = vadd.xlane.f32.xlu0 %v1522
        %v1530 = vpop.xlane.xlu0 %1529
        %v1531 = vmul.f32 %v1512, 0.0078125
        %v1532 = vmul.f32 %v1514, 0.0078125
        %v1533 = vmul.f32 %v1516, 0.0078125
        %v1534 = vmul.f32 %v1518, 0.0078125
        %v1535 = vmul.f32 %v1524, 0.0078125
        %v1536 = vmul.f32 %v1526, 0.0078125
        %v1537 = vmul.f32 %v1528, 0.0078125
        %v1538 = vmul.f32 %v1530, 0.0078125
        %v1539 = vmul.f32 %v1531, %v1531
        %v1540 = vmul.f32 %v1532, %v1532
        %v1541 = vmul.f32 %v1533, %v1533
        %v1542 = vmul.f32 %v1534, %v1534
        %v1543 = vsub.f32 %v1535, %v1539
        %v1544 = vsub.f32 %v1536, %v1540
        %v1545 = vsub.f32 %v1537, %v1541
        %v1546 = vsub.f32 %v1538, %v1542
        %v1547 = vsub.f32 %v1497, %v1531
        %v1548 = vsub.f32 %v1500, %v1532
        %v1549 = vsub.f32 %v1505, %v1533
        %v1550 = vsub.f32 %v1508, %v1534
        %v1551 = vadd.f32 %v1543, 1e-05
        %v1552 = vadd.f32 %v1544, 1e-05
        %v1553 = vadd.f32 %v1545, 1e-05
        %v1554 = vadd.f32 %v1546, 1e-05
        %v1555 = vrsqrt.pop %v1551
        %v1556 = vrsqrt.pop %v1552
        %v1557 = vrsqrt.pop %v1553
        %v1558 = vrsqrt.pop %v1554
        %v1559 = vmul.f32 %v1547, %v1555
        %v1560 = vmul.f32 %v1548, %v1556
        %v1561 = vmul.f32 %v1549, %v1557
        %v1562 = vmul.f32 %v1550, %v1558
        %v1563 = vld [vmem:[#allocation14] sm:$0x1]
        %v1565 = vlaneseq
        %v1566 = vshrl.u32 %v1565, 7
        %v1567 = vsub.s32 0, %v1566
        %v1568 = vrot.slane %v1563, %v1567
        %v1570 = vmul.f32 %v1559, %v1568
        %v1571 = vmul.f32 %v1560, %v1568
        %v1572 = vmul.f32 %v1561, %v1568
        %v1573 = vmul.f32 %v1562, %v1568
        %v1574 = vld [vmem:[#allocation16] sm:$0x1]
        %v1576 = vlaneseq
        %v1577 = vshrl.u32 %v1576, 7
        %v1578 = vsub.s32 0, %v1577
        %v1579 = vrot.slane %v1574, %v1578
        %v1581 = vadd.f32 %v1570, %v1579
        %v1582 = vadd.f32 %v1571, %v1579
        %v1583 = vadd.f32 %v1572, %v1579
        %v1584 = vadd.f32 %v1573, %v1579
        %v1585 = vpack.c.bf16 %v1582, %v1581
        %v1586 = vpack.c.bf16 %v1584, %v1583
        %v1587 = vld [vmem:[#allocation17] sm:$0xf]
        %v1588 = vld [vmem:[#allocation17 + $0x4] sm:$0xf]
        %v1589 = vld [vmem:[#allocation17 + $0x8] sm:$0xf]
        %v1590 = vld [vmem:[#allocation17 + $0xc] sm:$0xf]
        %v1591 = vld [vmem:[#allocation17 + $0x10] sm:$0xf]
        %v1592 = vld [vmem:[#allocation17 + $0x14] sm:$0xf]
        %v1593 = vld [vmem:[#allocation17 + $0x18] sm:$0xf]
        %v1594 = vld [vmem:[#allocation17 + $0x1c] sm:$0xf]
        %v1595 = vld [vmem:[#allocation17 + $0x20] sm:$0xf]
        %v1596 = vld [vmem:[#allocation17 + $0x24] sm:$0xf]
        %v1597 = vld [vmem:[#allocation17 + $0x28] sm:$0xf]
        %v1598 = vld [vmem:[#allocation17 + $0x2c] sm:$0xf]
        %v1599 = vld [vmem:[#allocation17 + $0x30] sm:$0xf]
        %v1600 = vld [vmem:[#allocation17 + $0x34] sm:$0xf]
        %v1601 = vld [vmem:[#allocation17 + $0x38] sm:$0xf]
        %v1602 = vld [vmem:[#allocation17 + $0x3c] sm:$0xf]
        %v1603 = vld [vmem:[#allocation19] sm:$0x1]
        %v1605 = vlaneseq
        %v1606 = vshrl.u32 %v1605, 7
        %v1607 = vsub.s32 0, %v1606
        %v1608 = vrot.slane %v1603, %v1607
        %v1626 = vunpack.c.l.b16 %v1587
        %v1627 = vunpack.c.l.b16 %v1588
        %v1628 = vunpack.c.l.b16 %v1589
        %v1629 = vunpack.c.l.b16 %v1590
        %v1630 = vunpack.c.l.b16 %v1591
        %v1631 = vunpack.c.l.b16 %v1592
        %v1632 = vunpack.c.l.b16 %v1593
        %v1633 = vunpack.c.l.b16 %v1594
        %v1634 = vunpack.c.l.b16 %v1595
        %v1635 = vunpack.c.l.b16 %v1596
        %v1636 = vunpack.c.l.b16 %v1597
        %v1637 = vunpack.c.l.b16 %v1598
        %v1638 = vunpack.c.l.b16 %v1599
        %v1639 = vunpack.c.l.b16 %v1600
        %v1640 = vunpack.c.l.b16 %v1601
        %v1641 = vunpack.c.l.b16 %v1602
        %v1642 = vpack.c.b16 %v1627, %v1626
        %v1643 = vpack.c.b16 %v1629, %v1628
        %v1644 = vpack.c.b16 %v1631, %v1630
        %v1645 = vpack.c.b16 %v1633, %v1632
        %v1646 = vpack.c.b16 %v1635, %v1634
        %v1647 = vpack.c.b16 %v1637, %v1636
        %v1648 = vpack.c.b16 %v1639, %v1638
        %v1649 = vpack.c.b16 %v1641, %v1640
        %1658 = vmatprep.subr.bf16.mxu0 0
        %1659 = vmatpush1.bf16.msra.mxu0 %v1642
        %1660 = vmatprep.subr.bf16.mxu0 0
        %1661 = vmatpush1.bf16.msra.mxu0 %v1643
        %1662 = vmatprep.subr.bf16.mxu0 0
        %1663 = vmatpush1.bf16.msra.mxu0 %v1644
        %1664 = vmatprep.subr.bf16.mxu0 0
        %1665 = vmatpush1.bf16.msra.mxu0 %v1645
        %1666 = vmatprep.subr.bf16.mxu0 0
        %1667 = vmatpush1.bf16.msra.mxu0 %v1646
        %1668 = vmatprep.subr.bf16.mxu0 0
        %1669 = vmatpush1.bf16.msra.mxu0 %v1647
        %1670 = vmatprep.subr.bf16.mxu0 0
        %1671 = vmatpush1.bf16.msra.mxu0 %v1648
        %1672 = vmatprep.subr.bf16.mxu0 0
        %1673 = vmatpush1.bf16.msra.mxu0 %v1649
        %1674 = vmatprep.subr.bf16.mxu0 0
        %1675 = vmatpush1.bf16.msra.mxu0 0
        %1676 = vmatprep.subr.bf16.mxu0 0
        %1677 = vmatpush1.bf16.msra.mxu0 0
        %1678 = vmatprep.subr.bf16.mxu0 0
        %1679 = vmatpush1.bf16.msra.mxu0 0
        %1680 = vmatprep.subr.bf16.mxu0 0
        %1681 = vmatpush1.bf16.msra.mxu0 0
        %1682 = vmatprep.subr.bf16.mxu0 0
        %1683 = vmatpush1.bf16.msra.mxu0 0
        %1684 = vmatprep.subr.bf16.mxu0 0
        %1685 = vmatpush1.bf16.msra.mxu0 0
        %1686 = vmatprep.subr.bf16.mxu0 0
        %1687 = vmatpush1.bf16.msra.mxu0 0
        %1688 = vmatprep.subr.bf16.mxu0 0
        %1689 = vmatpush1.bf16.msra.mxu0 0
        %1690 = vmatprep.mubr.bf16.mxu0 0
        %1691 = vmatmul.mubr.bf16.gmra.mrb[0].mxu0 %v1585
        %v1692 = vpop.f32.mrb[0].mxu0
        %v1693 = vadd.f32 %v1608, %v1692
        %v1694 = vpop.f32.mrb[0].mxu0
        %v1695 = vpop.f32.mrb[0].mxu0
        %v1696 = vadd.f32 %v1608, %v1695
        %v1697 = vpop.f32.mrb[0].mxu0
        %1698 = vmatprep.mubr.bf16.mxu0 0
        %1699 = vmatmul.mubr.bf16.gmra.mrb[0].mxu0 %v1586
        %v1700 = vpop.f32.mrb[0].mxu0
        %v1701 = vadd.f32 %v1608, %v1700
        %v1702 = vpop.f32.mrb[0].mxu0
        %v1703 = vpop.f32.mrb[0].mxu0
        %v1704 = vadd.f32 %v1608, %v1703
        %v1705 = vpop.f32.mrb[0].mxu0
        %1706 = vdwg.mxu0
        %1707 = vst [vmem:[%s538] sm:$0xff] %v1693
        %1708 = vst [vmem:[%s538 + $0x8] sm:$0xff] %v1696
        %1709 = vst [vmem:[%s538 + $0x10] sm:$0xff] %v1701
        %1710 = vst [vmem:[%s538 + $0x18] sm:$0xff] %v1704
        %s1711 = sand.u32 %s277, 1
        %s1712 = scalar_lea.sflag [#allocation4], %s1711
        %s1713 = sand.u32 %s277, 1
        %s1714 = smul.addr %s1713, 32
        %s1715 = scalar_lea.vmem [#allocation20], %s1714
        // Predicated region
        $region109: #{tpu_custom_call.1} parent=63 // pred_check
          %p1716 = pneg %p287
        $region110: #{tpu_custom_call.1} parent=63 // pred_check_branch
          %1718 = sbr.rel (%p1716) target = $region112
        $region111: #{tpu_custom_call.1} parent=63 // pred_region
          %s1719 = smul.u32 4, %s33
          %s1721 = ssub.s32 512, 512
          %1722 = vsyncadd %s1712, %s1721
          %s1723 = smul.addr %s1719, 128
          %s1724 = scalar_lea.hbm %s11, %s1723
          %s1725 = sshll.u32 %s1715, 4
          %s1726 = int_to_ptr.vmem [resolvable:$true] %s1725
          %1731 = dma.vmem_to_hbm [thread:$0]  %s1726, 512, %s1724, %s1712, 128, 128, 8
        $region112: #{tpu_custom_call.1} parent=63 // pred_fallthru
          _
      $region64: #{tpu_custom_call.1} parent=5 // pred_fallthru
        _
      %p1732 = scmp.le.s32.totalorder 2, %s28
      // Predicated region
      $region113: #{tpu_custom_call.1} parent=5 // pred_check
        %p1733 = pneg %p1732
      $region114: #{tpu_custom_call.1} parent=5 // pred_check_branch
        %1735 = sbr.rel (%p1733) target = $region116
      $region115: #{tpu_custom_call.1} parent=5 // pred_region
        %s1736 = ssub.s32 %s28, 2
        // Predicated region
        $region117: #{tpu_custom_call.1} parent=115 // pred_check
          %p1737 = pneg %p293
        $region118: #{tpu_custom_call.1} parent=115 // pred_check_branch
          %1739 = sbr.rel (%p1737) target = $region120
        $region119: #{tpu_custom_call.1} parent=115 // pred_region
          %s1740 = sand.u32 %s278, 1
          %s1741 = scalar_lea.sflag [#allocation4], %s1740
          %s1742 = sand.u32 %s278, 1
          %s1743 = smul.addr %s1742, 32
          %s1744 = scalar_lea.vmem [#allocation20], %s1743
          %1745 = dma.done %s1741, 512
        $region120: #{tpu_custom_call.1} parent=115 // pred_fallthru
          _
      $region116: #{tpu_custom_call.1} parent=5 // pred_fallthru
        _
    $region6: #{tpu_custom_call.1} parent=1 // loop_footer
      %s32 = sadd.s32 1, %s28
    $region7: #{tpu_custom_call.1} parent=1 // loop_footer_branch
      %27 = sbr.rel target = $region3
    $region8: #{tpu_custom_call.1} parent=1 // loop_exit
      _
    %1746 = vsyncpa [#allocation3], 1
    %s1747 = scalar_lea.sflag [#allocation3], 1
    %1748 = vsyncpa %s1747, 1
    %1749 = vsyncpa [#allocation6], 1
    %1750 = vsyncpa [#allocation9], 1
    %1751 = vsyncpa [#allocation12], 1
    %1752 = vsyncpa [#allocation15], 1
    %1753 = vsyncpa [#allocation18], 1
    %1754 = vsyncpa [#allocation4], 1
    %s1755 = scalar_lea.sflag [#allocation4], 1
    %1756 = vsyncpa %s1755, 1

</llo_original>
